<compile_context>
chip_gen: v7x
topology: tpu7x:2x2x1
jax: 0.10.0
libtpu: 0.0.40
codegen_flags: <defaults>
</compile_context>

<pallas_src>
import functools

import jax
import jax.numpy as jnp
from jax.experimental import pallas as pl


# ----------------------------- Pallas kernel --------------------------------

def _fused_layer_kernel(*refs, has_bias, has_bn, leaky, neg_slope, eps):
    """out = LeakyReLU?(BN?(x @ w + b?)) for one whole conv layer.

    refs = (x, w[, b][, gamma, beta], out).  x/w are bf16 (MXU-native), the
    accumulator and all epilogue math stay f32 (v5e has no bf16 VPU/EUP).
    The full (M, N) layer is resident in VMEM, so BatchNorm batch statistics
    are computed directly on the f32 accumulator inside the kernel.
    """
    it = iter(refs)
    x_ref = next(it)
    w_ref = next(it)
    b_ref = next(it) if has_bias else None
    g_ref = next(it) if has_bn else None
    beta_ref = next(it) if has_bn else None
    o_ref = next(it)

    acc = jnp.dot(x_ref[...], w_ref[...], preferred_element_type=jnp.float32)
    if has_bias:
        acc = acc + b_ref[...]                       # (1, N) broadcast
    if has_bn:
        # BatchNorm2d, training mode: biased batch stats over all M rows.
        mean = jnp.mean(acc, axis=0, keepdims=True)
        xc = acc - mean
        var = jnp.mean(xc * xc, axis=0, keepdims=True)
        inv = g_ref[...] * jax.lax.rsqrt(var + eps)  # rsqrt -> EUP slot
        acc = xc * inv + beta_ref[...]
    if leaky:
        acc = jnp.where(acc >= 0, acc, neg_slope * acc)
    o_ref[...] = acc.astype(o_ref.dtype)


def fused_conv_layer(patches, wmat, bias, gamma, beta, *, has_bn, leaky,
                     neg_slope=0.2, eps=1e-5):
    """patches:(M,K) bf16, wmat:(K,N) bf16, bias/gamma/beta:(1,N) f32 or None."""
    M = patches.shape[0]
    N = wmat.shape[1]
    has_bias = bias is not None
    args = [patches, wmat]
    if has_bias:
        args.append(bias)
    if has_bn:
        args += [gamma, beta]
    kernel = functools.partial(
        _fused_layer_kernel, has_bias=has_bias, has_bn=has_bn,
        leaky=leaky, neg_slope=neg_slope, eps=eps)
    # Single invocation, no grid: every operand is one full-array VMEM block
    # (block_shape == array dims satisfies the (8,128) rule).  Output is
    # unpadded -- masked stores on narrow channel counts beat writing and then
    # slicing 128-lane padding.
    return pl.pallas_call(
        kernel,
        out_shape=jax.ShapeDtypeStruct((M, N), jnp.float32),
    )(*args)


# ------------------------------- JAX glue ------------------------------------

def _im2col_nhwc(x, kh, kw, stride, pad):
    """x: (N, H, W, C) -> ((N*OH*OW, kh*kw*C), OH, OW); K order = (kh, kw, C)."""
    n, h, w, c = x.shape
    xp = jnp.pad(x, ((0, 0), (pad, pad), (pad, pad), (0, 0)))
    oh = (h + 2 * pad - kh) // stride + 1
    ow = (w + 2 * pad - kw) // stride + 1
    cols = []
    for i in range(kh):
        for j in range(kw):
            cols.append(xp[:, i:i + stride * (oh - 1) + 1:stride,
                               j:j + stride * (ow - 1) + 1:stride, :])
    patches = jnp.concatenate(cols, axis=-1)         # (N, OH, OW, kh*kw*C)
    return patches.reshape(n * oh * ow, kh * kw * c), oh, ow


def init_params(key, in_ch, ndf=8, n_layers=3):
    # (cin, cout, stride, has_bias, has_bn, leaky)
    cfg = [(in_ch, ndf, 2, True, False, True)]
    nf = 1
    for n in range(1, n_layers):
        nf_prev, nf = nf, min(2 ** n, 8)
        cfg.append((ndf * nf_prev, ndf * nf, 2, False, True, True))
    nf_prev, nf = nf, min(2 ** n_layers, 8)
    cfg.append((ndf * nf_prev, ndf * nf, 1, False, True, True))
    cfg.append((ndf * nf, 1, 1, True, False, False))

    params = []
    for (cin, cout, stride, has_bias, has_bn, leaky) in cfg:
        key, k1, k2, k3, k4 = jax.random.split(key, 5)
        p = {
            "w": 0.02 * jax.random.normal(k1, (cout, cin, 4, 4), jnp.float32),
            "b": (0.02 * jax.random.normal(k2, (cout,), jnp.float32)
                  if has_bias else None),
            "stride": stride,
            "bn": has_bn,
            "leaky": leaky,
        }
        if has_bn:
            p["gamma"] = 1.0 + 0.02 * jax.random.normal(k3, (cout,), jnp.float32)
            p["beta"] = 0.02 * jax.random.normal(k4, (cout,), jnp.float32)
        params.append(p)
    return params


def prepare_params(params):
    """Static prep: matmul-layout bf16 weights + (1, N) epilogue vectors."""
    prepped = []
    for p in params:
        cout = p["w"].shape[0]
        # (cout, cin, kh, kw) -> (kh, kw, cin, cout) -> (kh*kw*cin, cout)
        wmat = jnp.transpose(p["w"], (2, 3, 1, 0)).reshape(-1, cout)
        prepped.append({
            "wmat": wmat.astype(jnp.bfloat16),
            "b": None if p["b"] is None else p["b"].reshape(1, cout),
            "gamma": p["gamma"].reshape(1, cout) if p["bn"] else None,
            "beta": p["beta"].reshape(1, cout) if p["bn"] else None,
            "stride": p["stride"],
            "bn": p["bn"],
            "leaky": p["leaky"],
        })
    return prepped


def discriminator_forward(prepped, x_nchw):
    """x: (N, C, H, W) f32 -> (N, 1, H', W') patch logits (NCHW)."""
    n = x_nchw.shape[0]
    cur = jnp.transpose(x_nchw, (0, 2, 3, 1))        # NHWC internally
    for p in prepped:
        patches, oh, ow = _im2col_nhwc(cur, 4, 4, p["stride"], 1)
        flat = fused_conv_layer(
            patches.astype(jnp.bfloat16),            # bf16 feed to the MXU
            p["wmat"], p["b"], p["gamma"], p["beta"],
            has_bn=p["bn"], leaky=p["leaky"])
        cur = flat.reshape(n, oh, ow, -1)
    return jnp.transpose(cur, (0, 3, 1, 2))          # back to NCHW at the edge


# --------------------------- pure-JAX reference ------------------------------

def _ref_forward(params, x):
    """Same numerics as the kernel path: bf16 conv inputs, f32 accumulation."""
    def leaky(v):
        return jnp.where(v >= 0, v, 0.2 * v)
    cur = x
    for p in params:
        y = jax.lax.conv_general_dilated(
            cur.astype(jnp.bfloat16), p["w"].astype(jnp.bfloat16),
            (p["stride"], p["stride"]), ((1, 1), (1, 1)),
            dimension_numbers=("NCHW", "OIHW", "NCHW"),
            preferred_element_type=jnp.float32)
        if p["b"] is not None:
            y = y + p["b"].reshape(1, -1, 1, 1)
        if p["bn"]:
            mean = jnp.mean(y, axis=(0, 2, 3), keepdims=True)
            var = jnp.var(y, axis=(0, 2, 3), keepdims=True)
            y = (y - mean) / jnp.sqrt(var + 1e-5)
            y = y * p["gamma"].reshape(1, -1, 1, 1) + p["beta"].reshape(1, -1, 1, 1)
        if p["leaky"]:
            y = leaky(y)
        cur = y
    return cur


if __name__ == "__main__":
    key = jax.random.PRNGKey(0)
    # small but deep enough for the 5-layer PatchGAN: 32 -> 16 -> 8 -> 4 -> 3 -> 2
    x = jax.random.normal(key, (2, 1, 32, 32), jnp.float32)
    params = init_params(jax.random.PRNGKey(1), in_ch=1, ndf=8)
    prepped = prepare_params(params)

    fwd = jax.jit(lambda inp: discriminator_forward(prepped, inp))
    out = jax.block_until_ready(fwd(x))

    ref = _ref_forward(params, x)
    assert out.shape == ref.shape == (2, 1, 2, 2), out.shape
    max_err = float(jnp.max(jnp.abs(out - ref)))
    if bool(jnp.all(jnp.isfinite(out))) and max_err < 1e-2:
        print("KERNEL_OK")
    else:
        print(f"MISMATCH max_err={max_err}")
</pallas_src>

<mosaic_0001>
module attributes {stable_mosaic.version = 11 : i64} {
  func.func @_fused_layer_kernel(%arg0: memref<512x16xbf16, #tpu.memory_space<vmem>>, %arg1: memref<16x8xbf16, #tpu.memory_space<vmem>>, %arg2: memref<1x8xf32, #tpu.memory_space<vmem>>, %arg3: memref<512x8xf32, #tpu.memory_space<vmem>>) attributes {dimension_semantics = [], scalar_prefetch = 0 : i64, scratch_operands = 0 : i64, tpu.core_type = #tpu.core_type<tc>} {
    %c0 = arith.constant 0 : index
    %c0_0 = arith.constant 0 : index
    %0 = vector.load %arg0[%c0, %c0_0] : memref<512x16xbf16, #tpu.memory_space<vmem>>, vector<512x16xbf16>
    %c0_1 = arith.constant 0 : index
    %c0_2 = arith.constant 0 : index
    %1 = vector.load %arg1[%c0_1, %c0_2] : memref<16x8xbf16, #tpu.memory_space<vmem>>, vector<16x8xbf16>
    %cst = arith.constant dense<0.000000e+00> : vector<512x8xf32>
    %2 = tpu.matmul %0, %1, %cst {dimension_numbers = #tpu.dot_dimension_numbers<[1], [0], [0], [1], [0, 0, 1, 1], [], []>} : vector<512x16xbf16>, vector<16x8xbf16>, vector<512x8xf32> -> vector<512x8xf32>
    %c0_3 = arith.constant 0 : index
    %c0_4 = arith.constant 0 : index
    %3 = vector.load %arg2[%c0_3, %c0_4] : memref<1x8xf32, #tpu.memory_space<vmem>>, vector<1x8xf32>
    %4 = vector.broadcast %3 : vector<1x8xf32> to vector<512x8xf32>
    %5 = arith.addf %2, %4 : vector<512x8xf32>
    %cst_5 = arith.constant 0.000000e+00 : f32
    %6 = vector.broadcast %cst_5 : f32 to vector<512x8xf32>
    %7 = arith.cmpf oge, %5, %6 : vector<512x8xf32>
    %cst_6 = arith.constant 2.000000e-01 : f32
    %8 = vector.broadcast %cst_6 : f32 to vector<512x8xf32>
    %9 = arith.mulf %8, %5 : vector<512x8xf32>
    %10 = arith.select %7, %5, %9 : vector<512x8xi1>, vector<512x8xf32>
    %c0_7 = arith.constant 0 : index
    %c0_8 = arith.constant 0 : index
    %11 = vector.load %arg3[%c0_7, %c0_8] : memref<512x8xf32, #tpu.memory_space<vmem>>, vector<512x8xf32>
    tpu.vector_store %arg3[%c0_7, %c0_8], %10 {strides = array<i32>} : memref<512x8xf32, #tpu.memory_space<vmem>>, vector<512x8xf32>,
    return
  }
}

module attributes {stable_mosaic.version = 11 : i64} {
  func.func @_fused_layer_kernel(%arg0: memref<128x128xbf16, #tpu.memory_space<vmem>>, %arg1: memref<128x16xbf16, #tpu.memory_space<vmem>>, %arg2: memref<1x16xf32, #tpu.memory_space<vmem>>, %arg3: memref<1x16xf32, #tpu.memory_space<vmem>>, %arg4: memref<128x16xf32, #tpu.memory_space<vmem>>) attributes {dimension_semantics = [], scalar_prefetch = 0 : i64, scratch_operands = 0 : i64, tpu.core_type = #tpu.core_type<tc>} {
    %c0 = arith.constant 0 : index
    %c0_0 = arith.constant 0 : index
    %0 = vector.load %arg0[%c0, %c0_0] : memref<128x128xbf16, #tpu.memory_space<vmem>>, vector<128x128xbf16>
    %c0_1 = arith.constant 0 : index
    %c0_2 = arith.constant 0 : index
    %1 = vector.load %arg1[%c0_1, %c0_2] : memref<128x16xbf16, #tpu.memory_space<vmem>>, vector<128x16xbf16>
    %cst = arith.constant dense<0.000000e+00> : vector<128x16xf32>
    %2 = tpu.matmul %0, %1, %cst {dimension_numbers = #tpu.dot_dimension_numbers<[1], [0], [0], [1], [0, 0, 1, 1], [], []>} : vector<128x128xbf16>, vector<128x16xbf16>, vector<128x16xf32> -> vector<128x16xf32>
    %cst_3 = arith.constant dense<0.000000e+00> : vector<16xf32>
    %3 = vector.multi_reduction <add>, %2, %cst_3 [0] : vector<128x16xf32> to vector<16xf32>
    %4 = vector.shape_cast %3 : vector<16xf32> to vector<1x16xf32>
    %cst_4 = arith.constant 1.280000e+02 : f32
    %5 = vector.broadcast %cst_4 : f32 to vector<1x16xf32>
    %6 = arith.divf %4, %5 : vector<1x16xf32>
    %7 = vector.broadcast %6 : vector<1x16xf32> to vector<128x16xf32>
    %8 = arith.subf %2, %7 : vector<128x16xf32>
    %9 = arith.mulf %8, %8 : vector<128x16xf32>
    %cst_5 = arith.constant dense<0.000000e+00> : vector<16xf32>
    %10 = vector.multi_reduction <add>, %9, %cst_5 [0] : vector<128x16xf32> to vector<16xf32>
    %11 = vector.shape_cast %10 : vector<16xf32> to vector<1x16xf32>
    %cst_6 = arith.constant 1.280000e+02 : f32
    %12 = vector.broadcast %cst_6 : f32 to vector<1x16xf32>
    %13 = arith.divf %11, %12 : vector<1x16xf32>
    %c0_7 = arith.constant 0 : index
    %c0_8 = arith.constant 0 : index
    %14 = vector.load %arg2[%c0_7, %c0_8] : memref<1x16xf32, #tpu.memory_space<vmem>>, vector<1x16xf32>
    %cst_9 = arith.constant 9.99999974E-6 : f32
    %15 = vector.broadcast %cst_9 : f32 to vector<1x16xf32>
    %16 = arith.addf %13, %15 : vector<1x16xf32>
    %17 = math.rsqrt %16 : vector<1x16xf32>
    %18 = arith.mulf %14, %17 : vector<1x16xf32>
    %19 = vector.broadcast %18 : vector<1x16xf32> to vector<128x16xf32>
    %20 = arith.mulf %8, %19 : vector<128x16xf32>
    %c0_10 = arith.constant 0 : index
    %c0_11 = arith.constant 0 : index
    %21 = vector.load %arg3[%c0_10, %c0_11] : memref<1x16xf32, #tpu.memory_space<vmem>>, vector<1x16xf32>
    %22 = vector.broadcast %21 : vector<1x16xf32> to vector<128x16xf32>
    %23 = arith.addf %20, %22 : vector<128x16xf32>
    %cst_12 = arith.constant 0.000000e+00 : f32
    %24 = vector.broadcast %cst_12 : f32 to vector<128x16xf32>
    %25 = arith.cmpf oge, %23, %24 : vector<128x16xf32>
    %cst_13 = arith.constant 2.000000e-01 : f32
    %26 = vector.broadcast %cst_13 : f32 to vector<128x16xf32>
    %27 = arith.mulf %26, %23 : vector<128x16xf32>
    %28 = arith.select %25, %23, %27 : vector<128x16xi1>, vector<128x16xf32>
    %c0_14 = arith.constant 0 : index
    %c0_15 = arith.constant 0 : index
    %29 = vector.load %arg4[%c0_14, %c0_15] : memref<128x16xf32, #tpu.memory_space<vmem>>, vector<128x16xf32>
    tpu.vector_store %arg4[%c0_14, %c0_15], %28 {strides = array<i32>} : memref<128x16xf32, #tpu.memory_space<vmem>>, vector<128x16xf32>,
    return
  }
}

module attributes {stable_mosaic.version = 11 : i64} {
  func.func @_fused_layer_kernel(%arg0: memref<32x256xbf16, #tpu.memory_space<vmem>>, %arg1: memref<256x32xbf16, #tpu.memory_space<vmem>>, %arg2: memref<1x32xf32, #tpu.memory_space<vmem>>, %arg3: memref<1x32xf32, #tpu.memory_space<vmem>>, %arg4: memref<32x32xf32, #tpu.memory_space<vmem>>) attributes {dimension_semantics = [], scalar_prefetch = 0 : i64, scratch_operands = 0 : i64, tpu.core_type = #tpu.core_type<tc>} {
    %c0 = arith.constant 0 : index
    %c0_0 = arith.constant 0 : index
    %0 = vector.load %arg0[%c0, %c0_0] : memref<32x256xbf16, #tpu.memory_space<vmem>>, vector<32x256xbf16>
    %c0_1 = arith.constant 0 : index
    %c0_2 = arith.constant 0 : index
    %1 = vector.load %arg1[%c0_1, %c0_2] : memref<256x32xbf16, #tpu.memory_space<vmem>>, vector<256x32xbf16>
    %cst = arith.constant dense<0.000000e+00> : vector<32x32xf32>
    %2 = tpu.matmul %0, %1, %cst {dimension_numbers = #tpu.dot_dimension_numbers<[1], [0], [0], [1], [0, 0, 1, 1], [], []>} : vector<32x256xbf16>, vector<256x32xbf16>, vector<32x32xf32> -> vector<32x32xf32>
    %cst_3 = arith.constant dense<0.000000e+00> : vector<32xf32>
    %3 = vector.multi_reduction <add>, %2, %cst_3 [0] : vector<32x32xf32> to vector<32xf32>
    %4 = vector.shape_cast %3 : vector<32xf32> to vector<1x32xf32>
    %cst_4 = arith.constant 3.200000e+01 : f32
    %5 = vector.broadcast %cst_4 : f32 to vector<1x32xf32>
    %6 = arith.divf %4, %5 : vector<1x32xf32>
    %7 = vector.broadcast %6 : vector<1x32xf32> to vector<32x32xf32>
    %8 = arith.subf %2, %7 : vector<32x32xf32>
    %9 = arith.mulf %8, %8 : vector<32x32xf32>
    %cst_5 = arith.constant dense<0.000000e+00> : vector<32xf32>
    %10 = vector.multi_reduction <add>, %9, %cst_5 [0] : vector<32x32xf32> to vector<32xf32>
    %11 = vector.shape_cast %10 : vector<32xf32> to vector<1x32xf32>
    %cst_6 = arith.constant 3.200000e+01 : f32
    %12 = vector.broadcast %cst_6 : f32 to vector<1x32xf32>
    %13 = arith.divf %11, %12 : vector<1x32xf32>
    %c0_7 = arith.constant 0 : index
    %c0_8 = arith.constant 0 : index
    %14 = vector.load %arg2[%c0_7, %c0_8] : memref<1x32xf32, #tpu.memory_space<vmem>>, vector<1x32xf32>
    %cst_9 = arith.constant 9.99999974E-6 : f32
    %15 = vector.broadcast %cst_9 : f32 to vector<1x32xf32>
    %16 = arith.addf %13, %15 : vector<1x32xf32>
    %17 = math.rsqrt %16 : vector<1x32xf32>
    %18 = arith.mulf %14, %17 : vector<1x32xf32>
    %19 = vector.broadcast %18 : vector<1x32xf32> to vector<32x32xf32>
    %20 = arith.mulf %8, %19 : vector<32x32xf32>
    %c0_10 = arith.constant 0 : index
    %c0_11 = arith.constant 0 : index
    %21 = vector.load %arg3[%c0_10, %c0_11] : memref<1x32xf32, #tpu.memory_space<vmem>>, vector<1x32xf32>
    %22 = vector.broadcast %21 : vector<1x32xf32> to vector<32x32xf32>
    %23 = arith.addf %20, %22 : vector<32x32xf32>
    %cst_12 = arith.constant 0.000000e+00 : f32
    %24 = vector.broadcast %cst_12 : f32 to vector<32x32xf32>
    %25 = arith.cmpf oge, %23, %24 : vector<32x32xf32>
    %cst_13 = arith.constant 2.000000e-01 : f32
    %26 = vector.broadcast %cst_13 : f32 to vector<32x32xf32>
    %27 = arith.mulf %26, %23 : vector<32x32xf32>
    %28 = arith.select %25, %23, %27 : vector<32x32xi1>, vector<32x32xf32>
    %c0_14 = arith.constant 0 : index
    %c0_15 = arith.constant 0 : index
    %29 = vector.load %arg4[%c0_14, %c0_15] : memref<32x32xf32, #tpu.memory_space<vmem>>, vector<32x32xf32>
    tpu.vector_store %arg4[%c0_14, %c0_15], %28 {strides = array<i32>} : memref<32x32xf32, #tpu.memory_space<vmem>>, vector<32x32xf32>,
    return
  }
}

module attributes {stable_mosaic.version = 11 : i64} {
  func.func @_fused_layer_kernel(%arg0: memref<18x512xbf16, #tpu.memory_space<vmem>>, %arg1: memref<512x64xbf16, #tpu.memory_space<vmem>>, %arg2: memref<1x64xf32, #tpu.memory_space<vmem>>, %arg3: memref<1x64xf32, #tpu.memory_space<vmem>>, %arg4: memref<18x64xf32, #tpu.memory_space<vmem>>) attributes {dimension_semantics = [], scalar_prefetch = 0 : i64, scratch_operands = 0 : i64, tpu.core_type = #tpu.core_type<tc>} {
    %c0 = arith.constant 0 : index
    %c0_0 = arith.constant 0 : index
    %0 = vector.load %arg0[%c0, %c0_0] : memref<18x512xbf16, #tpu.memory_space<vmem>>, vector<18x512xbf16>
    %c0_1 = arith.constant 0 : index
    %c0_2 = arith.constant 0 : index
    %1 = vector.load %arg1[%c0_1, %c0_2] : memref<512x64xbf16, #tpu.memory_space<vmem>>, vector<512x64xbf16>
    %cst = arith.constant dense<0.000000e+00> : vector<18x64xf32>
    %2 = tpu.matmul %0, %1, %cst {dimension_numbers = #tpu.dot_dimension_numbers<[1], [0], [0], [1], [0, 0, 1, 1], [], []>} : vector<18x512xbf16>, vector<512x64xbf16>, vector<18x64xf32> -> vector<18x64xf32>
    %cst_3 = arith.constant dense<0.000000e+00> : vector<64xf32>
    %3 = vector.multi_reduction <add>, %2, %cst_3 [0] : vector<18x64xf32> to vector<64xf32>
    %4 = vector.shape_cast %3 : vector<64xf32> to vector<1x64xf32>
    %cst_4 = arith.constant 1.800000e+01 : f32
    %5 = vector.broadcast %cst_4 : f32 to vector<1x64xf32>
    %6 = arith.divf %4, %5 : vector<1x64xf32>
    %7 = vector.broadcast %6 : vector<1x64xf32> to vector<18x64xf32>
    %8 = arith.subf %2, %7 : vector<18x64xf32>
    %9 = arith.mulf %8, %8 : vector<18x64xf32>
    %cst_5 = arith.constant dense<0.000000e+00> : vector<64xf32>
    %10 = vector.multi_reduction <add>, %9, %cst_5 [0] : vector<18x64xf32> to vector<64xf32>
    %11 = vector.shape_cast %10 : vector<64xf32> to vector<1x64xf32>
    %cst_6 = arith.constant 1.800000e+01 : f32
    %12 = vector.broadcast %cst_6 : f32 to vector<1x64xf32>
    %13 = arith.divf %11, %12 : vector<1x64xf32>
    %c0_7 = arith.constant 0 : index
    %c0_8 = arith.constant 0 : index
    %14 = vector.load %arg2[%c0_7, %c0_8] : memref<1x64xf32, #tpu.memory_space<vmem>>, vector<1x64xf32>
    %cst_9 = arith.constant 9.99999974E-6 : f32
    %15 = vector.broadcast %cst_9 : f32 to vector<1x64xf32>
    %16 = arith.addf %13, %15 : vector<1x64xf32>
    %17 = math.rsqrt %16 : vector<1x64xf32>
    %18 = arith.mulf %14, %17 : vector<1x64xf32>
    %19 = vector.broadcast %18 : vector<1x64xf32> to vector<18x64xf32>
    %20 = arith.mulf %8, %19 : vector<18x64xf32>
    %c0_10 = arith.constant 0 : index
    %c0_11 = arith.constant 0 : index
    %21 = vector.load %arg3[%c0_10, %c0_11] : memref<1x64xf32, #tpu.memory_space<vmem>>, vector<1x64xf32>
    %22 = vector.broadcast %21 : vector<1x64xf32> to vector<18x64xf32>
    %23 = arith.addf %20, %22 : vector<18x64xf32>
    %cst_12 = arith.constant 0.000000e+00 : f32
    %24 = vector.broadcast %cst_12 : f32 to vector<18x64xf32>
    %25 = arith.cmpf oge, %23, %24 : vector<18x64xf32>
    %cst_13 = arith.constant 2.000000e-01 : f32
    %26 = vector.broadcast %cst_13 : f32 to vector<18x64xf32>
    %27 = arith.mulf %26, %23 : vector<18x64xf32>
    %28 = arith.select %25, %23, %27 : vector<18x64xi1>, vector<18x64xf32>
    %c0_14 = arith.constant 0 : index
    %c0_15 = arith.constant 0 : index
    %29 = vector.load %arg4[%c0_14, %c0_15] : memref<18x64xf32, #tpu.memory_space<vmem>>, vector<18x64xf32>
    tpu.vector_store %arg4[%c0_14, %c0_15], %28 {strides = array<i32>} : memref<18x64xf32, #tpu.memory_space<vmem>>, vector<18x64xf32>,
    return
  }
}

module attributes {stable_mosaic.version = 11 : i64} {
  func.func @_fused_layer_kernel(%arg0: memref<8x1024xbf16, #tpu.memory_space<vmem>>, %arg1: memref<1024x1xbf16, #tpu.memory_space<vmem>>, %arg2: memref<1x1xf32, #tpu.memory_space<vmem>>, %arg3: memref<8x1xf32, #tpu.memory_space<vmem>>) attributes {dimension_semantics = [], scalar_prefetch = 0 : i64, scratch_operands = 0 : i64, tpu.core_type = #tpu.core_type<tc>} {
    %c0 = arith.constant 0 : index
    %c0_0 = arith.constant 0 : index
    %0 = vector.load %arg0[%c0, %c0_0] : memref<8x1024xbf16, #tpu.memory_space<vmem>>, vector<8x1024xbf16>
    %c0_1 = arith.constant 0 : index
    %c0_2 = arith.constant 0 : index
    %1 = vector.load %arg1[%c0_1, %c0_2] : memref<1024x1xbf16, #tpu.memory_space<vmem>>, vector<1024x1xbf16>
    %cst = arith.constant dense<0.000000e+00> : vector<8x1xf32>
    %2 = tpu.matmul %0, %1, %cst {dimension_numbers = #tpu.dot_dimension_numbers<[1], [0], [0], [1], [0, 0, 1, 1], [], []>} : vector<8x1024xbf16>, vector<1024x1xbf16>, vector<8x1xf32> -> vector<8x1xf32>
    %c0_3 = arith.constant 0 : index
    %c0_4 = arith.constant 0 : index
    %3 = vector.load %arg2[%c0_3, %c0_4] : memref<1x1xf32, #tpu.memory_space<vmem>>, vector<1x1xf32>
    %4 = vector.broadcast %3 : vector<1x1xf32> to vector<8x1xf32>
    %5 = arith.addf %2, %4 : vector<8x1xf32>
    %c0_5 = arith.constant 0 : index
    %c0_6 = arith.constant 0 : index
    %6 = vector.load %arg3[%c0_5, %c0_6] : memref<8x1xf32, #tpu.memory_space<vmem>>, vector<8x1xf32>
    tpu.vector_store %arg3[%c0_5, %c0_6], %5 {strides = array<i32>} : memref<8x1xf32, #tpu.memory_space<vmem>>, vector<8x1xf32>,
    return
  }
}

</mosaic_0001>

<llo_original>
// kernel: _lambda_.5
$region0: #{_lambda_.5}
  #allocation0 [shape = 'u32[]', space=smem, size = 0x4, offset = 0x4, fixed_abs, tag = 'smem constant byte address 0x4 - core index']
  #allocation1 [shape = 'u32[144,128]{1,0:T(1,128)}', space=vmem, size = 0x12000, scoped, tag = 'internal scratch']
  %s0 = inlined_call_operand.vmem [shape: bf16[512,16], index: 0, kind: input, shape index: {}]
  %s1 = inlined_call_operand.vmem [shape: bf16[16,8], index: 1, kind: input, shape index: {}]
  %s2 = inlined_call_operand.vmem [shape: f32[1,8], index: 2, kind: input, shape index: {}]
  %s3 = inlined_call_operand.vmem [shape: f32[512,8], index: 3, kind: output, shape index: {}]
  %s4 = sld [smem:[#allocation0]]
  $region22: #{_lambda_.5} parent=0
    _
  %s6 = ssub.s32 1, %s4
  %s7 = scalar_select 0, %s6, %s4
  // Predicated region
  $region2: #{_lambda_.5} parent=0 // pred_check
    _
  $region3: #{_lambda_.5} parent=0 // pred_check_branch
    %9 = sbr.rel (0) target = $region5
  $region4: #{_lambda_.5} parent=0 // pred_region
    _
  $region5: #{_lambda_.5} parent=0 // pred_fallthru
    _
  // Predicated region
  $region6: #{_lambda_.5} parent=0 // pred_check
    _
  $region7: #{_lambda_.5} parent=0 // pred_check_branch
    %11 = sbr.rel (0) target = $region9
  $region8: #{_lambda_.5} parent=0 // pred_region
    _
  $region9: #{_lambda_.5} parent=0 // pred_fallthru
    _
  // Predicated region
  $region10: #{_lambda_.5} parent=0 // pred_check
    _
  $region11: #{_lambda_.5} parent=0 // pred_check_branch
    %13 = sbr.rel (0) target = $region13
  $region12: #{_lambda_.5} parent=0 // pred_region
    _
  $region13: #{_lambda_.5} parent=0 // pred_fallthru
    _
  %v15 = vld [vmem:[%s0] sm:$0xf]
  %v16 = vld [vmem:[%s0 + $0x4] sm:$0xf]
  %v17 = vld [vmem:[%s0 + $0x8] sm:$0xf]
  %v18 = vld [vmem:[%s0 + $0xc] sm:$0xf]
  %v19 = vld [vmem:[%s0 + $0x10] sm:$0xf]
  %v20 = vld [vmem:[%s0 + $0x14] sm:$0xf]
  %v21 = vld [vmem:[%s0 + $0x18] sm:$0xf]
  %v22 = vld [vmem:[%s0 + $0x1c] sm:$0xf]
  %v23 = vld [vmem:[%s0 + $0x20] sm:$0xf]
  %v24 = vld [vmem:[%s0 + $0x24] sm:$0xf]
  %v25 = vld [vmem:[%s0 + $0x28] sm:$0xf]
  %v26 = vld [vmem:[%s0 + $0x2c] sm:$0xf]
  %v27 = vld [vmem:[%s0 + $0x30] sm:$0xf]
  %v28 = vld [vmem:[%s0 + $0x34] sm:$0xf]
  %v29 = vld [vmem:[%s0 + $0x38] sm:$0xf]
  %v30 = vld [vmem:[%s0 + $0x3c] sm:$0xf]
  %v31 = vld [vmem:[%s0 + $0x40] sm:$0xf]
  %v32 = vld [vmem:[%s0 + $0x44] sm:$0xf]
  %v33 = vld [vmem:[%s0 + $0x48] sm:$0xf]
  %v34 = vld [vmem:[%s0 + $0x4c] sm:$0xf]
  %v35 = vld [vmem:[%s0 + $0x50] sm:$0xf]
  %v36 = vld [vmem:[%s0 + $0x54] sm:$0xf]
  %v37 = vld [vmem:[%s0 + $0x58] sm:$0xf]
  %v38 = vld [vmem:[%s0 + $0x5c] sm:$0xf]
  %v39 = vld [vmem:[%s0 + $0x60] sm:$0xf]
  %v40 = vld [vmem:[%s0 + $0x64] sm:$0xf]
  %v41 = vld [vmem:[%s0 + $0x68] sm:$0xf]
  %v42 = vld [vmem:[%s0 + $0x6c] sm:$0xf]
  %v43 = vld [vmem:[%s0 + $0x70] sm:$0xf]
  %v44 = vld [vmem:[%s0 + $0x74] sm:$0xf]
  %v45 = vld [vmem:[%s0 + $0x78] sm:$0xf]
  %v46 = vld [vmem:[%s0 + $0x7c] sm:$0xf]
  %v47 = vld [vmem:[%s0 + $0x80] sm:$0xf]
  %v48 = vld [vmem:[%s0 + $0x84] sm:$0xf]
  %v49 = vld [vmem:[%s0 + $0x88] sm:$0xf]
  %v50 = vld [vmem:[%s0 + $0x8c] sm:$0xf]
  %v51 = vld [vmem:[%s0 + $0x90] sm:$0xf]
  %v52 = vld [vmem:[%s0 + $0x94] sm:$0xf]
  %v53 = vld [vmem:[%s0 + $0x98] sm:$0xf]
  %v54 = vld [vmem:[%s0 + $0x9c] sm:$0xf]
  %v55 = vld [vmem:[%s0 + $0xa0] sm:$0xf]
  %v56 = vld [vmem:[%s0 + $0xa4] sm:$0xf]
  %v57 = vld [vmem:[%s0 + $0xa8] sm:$0xf]
  %v58 = vld [vmem:[%s0 + $0xac] sm:$0xf]
  %v59 = vld [vmem:[%s0 + $0xb0] sm:$0xf]
  %v60 = vld [vmem:[%s0 + $0xb4] sm:$0xf]
  %v61 = vld [vmem:[%s0 + $0xb8] sm:$0xf]
  %v62 = vld [vmem:[%s0 + $0xbc] sm:$0xf]
  %v63 = vld [vmem:[%s0 + $0xc0] sm:$0xf]
  %v64 = vld [vmem:[%s0 + $0xc4] sm:$0xf]
  %v65 = vld [vmem:[%s0 + $0xc8] sm:$0xf]
  %v66 = vld [vmem:[%s0 + $0xcc] sm:$0xf]
  %v67 = vld [vmem:[%s0 + $0xd0] sm:$0xf]
  %v68 = vld [vmem:[%s0 + $0xd4] sm:$0xf]
  %v69 = vld [vmem:[%s0 + $0xd8] sm:$0xf]
  %v70 = vld [vmem:[%s0 + $0xdc] sm:$0xf]
  %v71 = vld [vmem:[%s0 + $0xe0] sm:$0xf]
  %v72 = vld [vmem:[%s0 + $0xe4] sm:$0xf]
  %v73 = vld [vmem:[%s0 + $0xe8] sm:$0xf]
  %v74 = vld [vmem:[%s0 + $0xec] sm:$0xf]
  %v75 = vld [vmem:[%s0 + $0xf0] sm:$0xf]
  %v76 = vld [vmem:[%s0 + $0xf4] sm:$0xf]
  %v77 = vld [vmem:[%s0 + $0xf8] sm:$0xf]
  %v78 = vld [vmem:[%s0 + $0xfc] sm:$0xf]
  %v79 = vld [vmem:[%s1] sm:$0xf]
  %v80 = vld [vmem:[%s1 + $0x4] sm:$0xf]
  %v81 = vld [vmem:[%s2] sm:$0x1]
  %v83 = vlaneseq
  %v84 = vshrl.u32 %v83, 7
  %v85 = vsub.s32 0, %v84
  %v86 = vrot.slane %v81, %v85
  %v152 = vunpack.c.l.b16 %v15
  %v153 = vunpack.c.l.b16 %v16
  %v154 = vunpack.c.l.b16 %v17
  %v155 = vunpack.c.l.b16 %v18
  %v156 = vunpack.c.l.b16 %v19
  %v157 = vunpack.c.l.b16 %v20
  %v158 = vunpack.c.l.b16 %v21
  %v159 = vunpack.c.l.b16 %v22
  %v160 = vunpack.c.l.b16 %v23
  %v161 = vunpack.c.l.b16 %v24
  %v162 = vunpack.c.l.b16 %v25
  %v163 = vunpack.c.l.b16 %v26
  %v164 = vunpack.c.l.b16 %v27
  %v165 = vunpack.c.l.b16 %v28
  %v166 = vunpack.c.l.b16 %v29
  %v167 = vunpack.c.l.b16 %v30
  %v168 = vunpack.c.l.b16 %v31
  %v169 = vunpack.c.l.b16 %v32
  %v170 = vunpack.c.l.b16 %v33
  %v171 = vunpack.c.l.b16 %v34
  %v172 = vunpack.c.l.b16 %v35
  %v173 = vunpack.c.l.b16 %v36
  %v174 = vunpack.c.l.b16 %v37
  %v175 = vunpack.c.l.b16 %v38
  %v176 = vunpack.c.l.b16 %v39
  %v177 = vunpack.c.l.b16 %v40
  %v178 = vunpack.c.l.b16 %v41
  %v179 = vunpack.c.l.b16 %v42
  %v180 = vunpack.c.l.b16 %v43
  %v181 = vunpack.c.l.b16 %v44
  %v182 = vunpack.c.l.b16 %v45
  %v183 = vunpack.c.l.b16 %v46
  %v184 = vunpack.c.l.b16 %v47
  %v185 = vunpack.c.l.b16 %v48
  %v186 = vunpack.c.l.b16 %v49
  %v187 = vunpack.c.l.b16 %v50
  %v188 = vunpack.c.l.b16 %v51
  %v189 = vunpack.c.l.b16 %v52
  %v190 = vunpack.c.l.b16 %v53
  %v191 = vunpack.c.l.b16 %v54
  %v192 = vunpack.c.l.b16 %v55
  %v193 = vunpack.c.l.b16 %v56
  %v194 = vunpack.c.l.b16 %v57
  %v195 = vunpack.c.l.b16 %v58
  %v196 = vunpack.c.l.b16 %v59
  %v197 = vunpack.c.l.b16 %v60
  %v198 = vunpack.c.l.b16 %v61
  %v199 = vunpack.c.l.b16 %v62
  %v200 = vunpack.c.l.b16 %v63
  %v201 = vunpack.c.l.b16 %v64
  %v202 = vunpack.c.l.b16 %v65
  %v203 = vunpack.c.l.b16 %v66
  %v204 = vunpack.c.l.b16 %v67
  %v205 = vunpack.c.l.b16 %v68
  %v206 = vunpack.c.l.b16 %v69
  %v207 = vunpack.c.l.b16 %v70
  %v208 = vunpack.c.l.b16 %v71
  %v209 = vunpack.c.l.b16 %v72
  %v210 = vunpack.c.l.b16 %v73
  %v211 = vunpack.c.l.b16 %v74
  %v212 = vunpack.c.l.b16 %v75
  %v213 = vunpack.c.l.b16 %v76
  %v214 = vunpack.c.l.b16 %v77
  %v215 = vunpack.c.l.b16 %v78
  %v216 = vpack.c.b16 %v153, %v152
  %v217 = vpack.c.b16 %v155, %v154
  %v218 = vpack.c.b16 %v157, %v156
  %v219 = vpack.c.b16 %v159, %v158
  %v220 = vpack.c.b16 %v161, %v160
  %v221 = vpack.c.b16 %v163, %v162
  %v222 = vpack.c.b16 %v165, %v164
  %v223 = vpack.c.b16 %v167, %v166
  %v224 = vpack.c.b16 %v169, %v168
  %v225 = vpack.c.b16 %v171, %v170
  %v226 = vpack.c.b16 %v173, %v172
  %v227 = vpack.c.b16 %v175, %v174
  %v228 = vpack.c.b16 %v177, %v176
  %v229 = vpack.c.b16 %v179, %v178
  %v230 = vpack.c.b16 %v181, %v180
  %v231 = vpack.c.b16 %v183, %v182
  %v232 = vpack.c.b16 %v185, %v184
  %v233 = vpack.c.b16 %v187, %v186
  %v234 = vpack.c.b16 %v189, %v188
  %v235 = vpack.c.b16 %v191, %v190
  %v236 = vpack.c.b16 %v193, %v192
  %v237 = vpack.c.b16 %v195, %v194
  %v238 = vpack.c.b16 %v197, %v196
  %v239 = vpack.c.b16 %v199, %v198
  %v240 = vpack.c.b16 %v201, %v200
  %v241 = vpack.c.b16 %v203, %v202
  %v242 = vpack.c.b16 %v205, %v204
  %v243 = vpack.c.b16 %v207, %v206
  %v244 = vpack.c.b16 %v209, %v208
  %v245 = vpack.c.b16 %v211, %v210
  %v246 = vpack.c.b16 %v213, %v212
  %v247 = vpack.c.b16 %v215, %v214
  %v250 = vunpack.c.l.b16 %v79
  %v251 = vunpack.c.l.b16 %v80
  %v252 = vpack.c.b16 %v251, %v250
  %vm254 = vcmask 130048
  %v256 = vsel %vm254, %v216, 0
  %v259 = vsel %vm254, %v217, 0
  %v262 = vsel %vm254, %v218, 0
  %v265 = vsel %vm254, %v219, 0
  %v268 = vsel %vm254, %v220, 0
  %v271 = vsel %vm254, %v221, 0
  %v274 = vsel %vm254, %v222, 0
  %v277 = vsel %vm254, %v223, 0
  %v280 = vsel %vm254, %v224, 0
  %v283 = vsel %vm254, %v225, 0
  %v286 = vsel %vm254, %v226, 0
  %v289 = vsel %vm254, %v227, 0
  %v292 = vsel %vm254, %v228, 0
  %v295 = vsel %vm254, %v229, 0
  %v298 = vsel %vm254, %v230, 0
  %v301 = vsel %vm254, %v231, 0
  %v304 = vsel %vm254, %v232, 0
  %v307 = vsel %vm254, %v233, 0
  %v310 = vsel %vm254, %v234, 0
  %v313 = vsel %vm254, %v235, 0
  %v316 = vsel %vm254, %v236, 0
  %v319 = vsel %vm254, %v237, 0
  %v322 = vsel %vm254, %v238, 0
  %v325 = vsel %vm254, %v239, 0
  %v328 = vsel %vm254, %v240, 0
  %v331 = vsel %vm254, %v241, 0
  %v334 = vsel %vm254, %v242, 0
  %v337 = vsel %vm254, %v243, 0
  %v340 = vsel %vm254, %v244, 0
  %v343 = vsel %vm254, %v245, 0
  %v346 = vsel %vm254, %v246, 0
  %v349 = vsel %vm254, %v247, 0
  %351 = vmatprep.subr.bf16.mxu0 0
  %352 = vmatpush1.bf16.msra.mxu0 %v252
  %353 = vmatprep.subr.bf16.mxu0 0
  %354 = vmatpush1.bf16.msra.mxu0 0
  %355 = vmatprep.subr.bf16.mxu0 0
  %356 = vmatpush1.bf16.msra.mxu0 0
  %357 = vmatprep.subr.bf16.mxu0 0
  %358 = vmatpush1.bf16.msra.mxu0 0
  %359 = vmatprep.subr.bf16.mxu0 0
  %360 = vmatpush1.bf16.msra.mxu0 0
  %361 = vmatprep.subr.bf16.mxu0 0
  %362 = vmatpush1.bf16.msra.mxu0 0
  %363 = vmatprep.subr.bf16.mxu0 0
  %364 = vmatpush1.bf16.msra.mxu0 0
  %365 = vmatprep.subr.bf16.mxu0 0
  %366 = vmatpush1.bf16.msra.mxu0 0
  %367 = vmatprep.subr.bf16.mxu0 0
  %368 = vmatpush1.bf16.msra.mxu0 0
  %369 = vmatprep.subr.bf16.mxu0 0
  %370 = vmatpush1.bf16.msra.mxu0 0
  %371 = vmatprep.subr.bf16.mxu0 0
  %372 = vmatpush1.bf16.msra.mxu0 0
  %373 = vmatprep.subr.bf16.mxu0 0
  %374 = vmatpush1.bf16.msra.mxu0 0
  %375 = vmatprep.subr.bf16.mxu0 0
  %376 = vmatpush1.bf16.msra.mxu0 0
  %377 = vmatprep.subr.bf16.mxu0 0
  %378 = vmatpush1.bf16.msra.mxu0 0
  %379 = vmatprep.subr.bf16.mxu0 0
  %380 = vmatpush1.bf16.msra.mxu0 0
  %381 = vmatprep.subr.bf16.mxu0 0
  %382 = vmatpush1.bf16.msra.mxu0 0
  %383 = vmatprep.mubr.bf16.mxu0 0
  %384 = vmatmul.mubr.bf16.gmra.mrb[0].mxu0 %v256
  %v385 = vpop.f32.mrb[0].mxu0
  %v386 = vadd.f32 %v86, %v385
  %v387 = vpop.f32.mrb[0].mxu0
  %v388 = vpop.f32.mrb[0].mxu0
  %v389 = vadd.f32 %v86, %v388
  %v390 = vpop.f32.mrb[0].mxu0
  %391 = vmatprep.mubr.bf16.mxu0 0
  %392 = vmatmul.mubr.bf16.gmra.mrb[0].mxu0 %v259
  %v393 = vpop.f32.mrb[0].mxu0
  %v394 = vadd.f32 %v86, %v393
  %v395 = vpop.f32.mrb[0].mxu0
  %v396 = vpop.f32.mrb[0].mxu0
  %v397 = vadd.f32 %v86, %v396
  %v398 = vpop.f32.mrb[0].mxu0
  %399 = vmatprep.mubr.bf16.mxu0 0
  %400 = vmatmul.mubr.bf16.gmra.mrb[0].mxu0 %v262
  %v401 = vpop.f32.mrb[0].mxu0
  %v402 = vadd.f32 %v86, %v401
  %v403 = vpop.f32.mrb[0].mxu0
  %v404 = vpop.f32.mrb[0].mxu0
  %v405 = vadd.f32 %v86, %v404
  %v406 = vpop.f32.mrb[0].mxu0
  %407 = vmatprep.mubr.bf16.mxu0 0
  %408 = vmatmul.mubr.bf16.gmra.mrb[0].mxu0 %v265
  %v409 = vpop.f32.mrb[0].mxu0
  %v410 = vadd.f32 %v86, %v409
  %v411 = vpop.f32.mrb[0].mxu0
  %v412 = vpop.f32.mrb[0].mxu0
  %v413 = vadd.f32 %v86, %v412
  %v414 = vpop.f32.mrb[0].mxu0
  %415 = vmatprep.mubr.bf16.mxu0 0
  %416 = vmatmul.mubr.bf16.gmra.mrb[0].mxu0 %v268
  %v417 = vpop.f32.mrb[0].mxu0
  %v418 = vadd.f32 %v86, %v417
  %v419 = vpop.f32.mrb[0].mxu0
  %v420 = vpop.f32.mrb[0].mxu0
  %v421 = vadd.f32 %v86, %v420
  %v422 = vpop.f32.mrb[0].mxu0
  %423 = vmatprep.mubr.bf16.mxu0 0
  %424 = vmatmul.mubr.bf16.gmra.mrb[0].mxu0 %v271
  %v425 = vpop.f32.mrb[0].mxu0
  %v426 = vadd.f32 %v86, %v425
  %v427 = vpop.f32.mrb[0].mxu0
  %v428 = vpop.f32.mrb[0].mxu0
  %v429 = vadd.f32 %v86, %v428
  %v430 = vpop.f32.mrb[0].mxu0
  %431 = vmatprep.mubr.bf16.mxu0 0
  %432 = vmatmul.mubr.bf16.gmra.mrb[0].mxu0 %v274
  %v433 = vpop.f32.mrb[0].mxu0
  %v434 = vadd.f32 %v86, %v433
  %v435 = vpop.f32.mrb[0].mxu0
  %v436 = vpop.f32.mrb[0].mxu0
  %v437 = vadd.f32 %v86, %v436
  %v438 = vpop.f32.mrb[0].mxu0
  %439 = vmatprep.mubr.bf16.mxu0 0
  %440 = vmatmul.mubr.bf16.gmra.mrb[0].mxu0 %v277
  %v441 = vpop.f32.mrb[0].mxu0
  %v442 = vadd.f32 %v86, %v441
  %v443 = vpop.f32.mrb[0].mxu0
  %v444 = vpop.f32.mrb[0].mxu0
  %v445 = vadd.f32 %v86, %v444
  %v446 = vpop.f32.mrb[0].mxu0
  %447 = vmatprep.mubr.bf16.mxu0 0
  %448 = vmatmul.mubr.bf16.gmra.mrb[0].mxu0 %v280
  %v449 = vpop.f32.mrb[0].mxu0
  %v450 = vadd.f32 %v86, %v449
  %v451 = vpop.f32.mrb[0].mxu0
  %v452 = vpop.f32.mrb[0].mxu0
  %v453 = vadd.f32 %v86, %v452
  %v454 = vpop.f32.mrb[0].mxu0
  %455 = vmatprep.mubr.bf16.mxu0 0
  %456 = vmatmul.mubr.bf16.gmra.mrb[0].mxu0 %v283
  %v457 = vpop.f32.mrb[0].mxu0
  %v458 = vadd.f32 %v86, %v457
  %v459 = vpop.f32.mrb[0].mxu0
  %v460 = vpop.f32.mrb[0].mxu0
  %v461 = vadd.f32 %v86, %v460
  %v462 = vpop.f32.mrb[0].mxu0
  %463 = vmatprep.mubr.bf16.mxu0 0
  %464 = vmatmul.mubr.bf16.gmra.mrb[0].mxu0 %v286
  %v465 = vpop.f32.mrb[0].mxu0
  %v466 = vadd.f32 %v86, %v465
  %v467 = vpop.f32.mrb[0].mxu0
  %v468 = vpop.f32.mrb[0].mxu0
  %v469 = vadd.f32 %v86, %v468
  %v470 = vpop.f32.mrb[0].mxu0
  %471 = vmatprep.mubr.bf16.mxu0 0
  %472 = vmatmul.mubr.bf16.gmra.mrb[0].mxu0 %v289
  %v473 = vpop.f32.mrb[0].mxu0
  %v474 = vadd.f32 %v86, %v473
  %v475 = vpop.f32.mrb[0].mxu0
  %v476 = vpop.f32.mrb[0].mxu0
  %v477 = vadd.f32 %v86, %v476
  %v478 = vpop.f32.mrb[0].mxu0
  %479 = vmatprep.mubr.bf16.mxu0 0
  %480 = vmatmul.mubr.bf16.gmra.mrb[0].mxu0 %v292
  %v481 = vpop.f32.mrb[0].mxu0
  %v482 = vadd.f32 %v86, %v481
  %v483 = vpop.f32.mrb[0].mxu0
  %v484 = vpop.f32.mrb[0].mxu0
  %v485 = vadd.f32 %v86, %v484
  %v486 = vpop.f32.mrb[0].mxu0
  %487 = vmatprep.mubr.bf16.mxu0 0
  %488 = vmatmul.mubr.bf16.gmra.mrb[0].mxu0 %v295
  %v489 = vpop.f32.mrb[0].mxu0
  %v490 = vadd.f32 %v86, %v489
  %v491 = vpop.f32.mrb[0].mxu0
  %v492 = vpop.f32.mrb[0].mxu0
  %v493 = vadd.f32 %v86, %v492
  %v494 = vpop.f32.mrb[0].mxu0
  %495 = vmatprep.mubr.bf16.mxu0 0
  %496 = vmatmul.mubr.bf16.gmra.mrb[0].mxu0 %v298
  %v497 = vpop.f32.mrb[0].mxu0
  %v498 = vadd.f32 %v86, %v497
  %v499 = vpop.f32.mrb[0].mxu0
  %v500 = vpop.f32.mrb[0].mxu0
  %v501 = vadd.f32 %v86, %v500
  %v502 = vpop.f32.mrb[0].mxu0
  %503 = vmatprep.mubr.bf16.mxu0 0
  %504 = vmatmul.mubr.bf16.gmra.mrb[0].mxu0 %v301
  %v505 = vpop.f32.mrb[0].mxu0
  %v506 = vadd.f32 %v86, %v505
  %v507 = vpop.f32.mrb[0].mxu0
  %v508 = vpop.f32.mrb[0].mxu0
  %v509 = vadd.f32 %v86, %v508
  %v510 = vpop.f32.mrb[0].mxu0
  %511 = vmatprep.mubr.bf16.mxu0 0
  %512 = vmatmul.mubr.bf16.gmra.mrb[0].mxu0 %v304
  %v513 = vpop.f32.mrb[0].mxu0
  %v514 = vadd.f32 %v86, %v513
  %v515 = vpop.f32.mrb[0].mxu0
  %v516 = vpop.f32.mrb[0].mxu0
  %v517 = vadd.f32 %v86, %v516
  %v518 = vpop.f32.mrb[0].mxu0
  %519 = vmatprep.mubr.bf16.mxu0 0
  %520 = vmatmul.mubr.bf16.gmra.mrb[0].mxu0 %v307
  %v521 = vpop.f32.mrb[0].mxu0
  %v522 = vadd.f32 %v86, %v521
  %v523 = vpop.f32.mrb[0].mxu0
  %v524 = vpop.f32.mrb[0].mxu0
  %v525 = vadd.f32 %v86, %v524
  %v526 = vpop.f32.mrb[0].mxu0
  %527 = vmatprep.mubr.bf16.mxu0 0
  %528 = vmatmul.mubr.bf16.gmra.mrb[0].mxu0 %v310
  %v529 = vpop.f32.mrb[0].mxu0
  %v530 = vadd.f32 %v86, %v529
  %v531 = vpop.f32.mrb[0].mxu0
  %v532 = vpop.f32.mrb[0].mxu0
  %v533 = vadd.f32 %v86, %v532
  %v534 = vpop.f32.mrb[0].mxu0
  %535 = vmatprep.mubr.bf16.mxu0 0
  %536 = vmatmul.mubr.bf16.gmra.mrb[0].mxu0 %v313
  %v537 = vpop.f32.mrb[0].mxu0
  %v538 = vadd.f32 %v86, %v537
  %v539 = vpop.f32.mrb[0].mxu0
  %v540 = vpop.f32.mrb[0].mxu0
  %v541 = vadd.f32 %v86, %v540
  %v542 = vpop.f32.mrb[0].mxu0
  %543 = vmatprep.mubr.bf16.mxu0 0
  %544 = vmatmul.mubr.bf16.gmra.mrb[0].mxu0 %v316
  %v545 = vpop.f32.mrb[0].mxu0
  %v546 = vadd.f32 %v86, %v545
  %v547 = vpop.f32.mrb[0].mxu0
  %v548 = vpop.f32.mrb[0].mxu0
  %v549 = vadd.f32 %v86, %v548
  %v550 = vpop.f32.mrb[0].mxu0
  %551 = vmatprep.mubr.bf16.mxu0 0
  %552 = vmatmul.mubr.bf16.gmra.mrb[0].mxu0 %v319
  %v553 = vpop.f32.mrb[0].mxu0
  %v554 = vadd.f32 %v86, %v553
  %v555 = vpop.f32.mrb[0].mxu0
  %v556 = vpop.f32.mrb[0].mxu0
  %v557 = vadd.f32 %v86, %v556
  %v558 = vpop.f32.mrb[0].mxu0
  %559 = vmatprep.mubr.bf16.mxu0 0
  %560 = vmatmul.mubr.bf16.gmra.mrb[0].mxu0 %v322
  %v561 = vpop.f32.mrb[0].mxu0
  %v562 = vadd.f32 %v86, %v561
  %v563 = vpop.f32.mrb[0].mxu0
  %v564 = vpop.f32.mrb[0].mxu0
  %v565 = vadd.f32 %v86, %v564
  %v566 = vpop.f32.mrb[0].mxu0
  %567 = vmatprep.mubr.bf16.mxu0 0
  %568 = vmatmul.mubr.bf16.gmra.mrb[0].mxu0 %v325
  %v569 = vpop.f32.mrb[0].mxu0
  %v570 = vadd.f32 %v86, %v569
  %v571 = vpop.f32.mrb[0].mxu0
  %v572 = vpop.f32.mrb[0].mxu0
  %v573 = vadd.f32 %v86, %v572
  %v574 = vpop.f32.mrb[0].mxu0
  %575 = vmatprep.mubr.bf16.mxu0 0
  %576 = vmatmul.mubr.bf16.gmra.mrb[0].mxu0 %v328
  %v577 = vpop.f32.mrb[0].mxu0
  %v578 = vadd.f32 %v86, %v577
  %v579 = vpop.f32.mrb[0].mxu0
  %v580 = vpop.f32.mrb[0].mxu0
  %v581 = vadd.f32 %v86, %v580
  %v582 = vpop.f32.mrb[0].mxu0
  %583 = vmatprep.mubr.bf16.mxu0 0
  %584 = vmatmul.mubr.bf16.gmra.mrb[0].mxu0 %v331
  %v585 = vpop.f32.mrb[0].mxu0
  %v586 = vadd.f32 %v86, %v585
  %v587 = vpop.f32.mrb[0].mxu0
  %v588 = vpop.f32.mrb[0].mxu0
  %v589 = vadd.f32 %v86, %v588
  %v590 = vpop.f32.mrb[0].mxu0
  %591 = vmatprep.mubr.bf16.mxu0 0
  %592 = vmatmul.mubr.bf16.gmra.mrb[0].mxu0 %v334
  %v593 = vpop.f32.mrb[0].mxu0
  %v594 = vadd.f32 %v86, %v593
  %v595 = vpop.f32.mrb[0].mxu0
  %v596 = vpop.f32.mrb[0].mxu0
  %v597 = vadd.f32 %v86, %v596
  %v598 = vpop.f32.mrb[0].mxu0
  %599 = vmatprep.mubr.bf16.mxu0 0
  %600 = vmatmul.mubr.bf16.gmra.mrb[0].mxu0 %v337
  %v601 = vpop.f32.mrb[0].mxu0
  %v602 = vadd.f32 %v86, %v601
  %v603 = vpop.f32.mrb[0].mxu0
  %v604 = vpop.f32.mrb[0].mxu0
  %v605 = vadd.f32 %v86, %v604
  %v606 = vpop.f32.mrb[0].mxu0
  %607 = vmatprep.mubr.bf16.mxu0 0
  %608 = vmatmul.mubr.bf16.gmra.mrb[0].mxu0 %v340
  %v609 = vpop.f32.mrb[0].mxu0
  %v610 = vadd.f32 %v86, %v609
  %v611 = vpop.f32.mrb[0].mxu0
  %v612 = vpop.f32.mrb[0].mxu0
  %v613 = vadd.f32 %v86, %v612
  %v614 = vpop.f32.mrb[0].mxu0
  %615 = vmatprep.mubr.bf16.mxu0 0
  %616 = vmatmul.mubr.bf16.gmra.mrb[0].mxu0 %v343
  %v617 = vpop.f32.mrb[0].mxu0
  %v618 = vadd.f32 %v86, %v617
  %v619 = vpop.f32.mrb[0].mxu0
  %v620 = vpop.f32.mrb[0].mxu0
  %v621 = vadd.f32 %v86, %v620
  %v622 = vpop.f32.mrb[0].mxu0
  %623 = vmatprep.mubr.bf16.mxu0 0
  %624 = vmatmul.mubr.bf16.gmra.mrb[0].mxu0 %v346
  %v625 = vpop.f32.mrb[0].mxu0
  %v626 = vadd.f32 %v86, %v625
  %v627 = vpop.f32.mrb[0].mxu0
  %v628 = vpop.f32.mrb[0].mxu0
  %v629 = vadd.f32 %v86, %v628
  %v630 = vpop.f32.mrb[0].mxu0
  %631 = vmatprep.mubr.bf16.mxu0 0
  %632 = vmatmul.mubr.bf16.gmra.mrb[0].mxu0 %v349
  %v633 = vpop.f32.mrb[0].mxu0
  %v634 = vadd.f32 %v86, %v633
  %v635 = vpop.f32.mrb[0].mxu0
  %v636 = vpop.f32.mrb[0].mxu0
  %v637 = vadd.f32 %v86, %v636
  %v638 = vpop.f32.mrb[0].mxu0
  %639 = vdwg.mxu0
  %vm640 = vcmp.ge.f32.partialorder %v386, 0.0
  %vm641 = vcmp.ge.f32.partialorder %v389, 0.0
  %vm642 = vcmp.ge.f32.partialorder %v394, 0.0
  %vm643 = vcmp.ge.f32.partialorder %v397, 0.0
  %vm644 = vcmp.ge.f32.partialorder %v402, 0.0
  %vm645 = vcmp.ge.f32.partialorder %v405, 0.0
  %vm646 = vcmp.ge.f32.partialorder %v410, 0.0
  %vm647 = vcmp.ge.f32.partialorder %v413, 0.0
  %vm648 = vcmp.ge.f32.partialorder %v418, 0.0
  %vm649 = vcmp.ge.f32.partialorder %v421, 0.0
  %vm650 = vcmp.ge.f32.partialorder %v426, 0.0
  %vm651 = vcmp.ge.f32.partialorder %v429, 0.0
  %vm652 = vcmp.ge.f32.partialorder %v434, 0.0
  %vm653 = vcmp.ge.f32.partialorder %v437, 0.0
  %vm654 = vcmp.ge.f32.partialorder %v442, 0.0
  %vm655 = vcmp.ge.f32.partialorder %v445, 0.0
  %vm656 = vcmp.ge.f32.partialorder %v450, 0.0
  %vm657 = vcmp.ge.f32.partialorder %v453, 0.0
  %vm658 = vcmp.ge.f32.partialorder %v458, 0.0
  %vm659 = vcmp.ge.f32.partialorder %v461, 0.0
  %vm660 = vcmp.ge.f32.partialorder %v466, 0.0
  %vm661 = vcmp.ge.f32.partialorder %v469, 0.0
  %vm662 = vcmp.ge.f32.partialorder %v474, 0.0
  %vm663 = vcmp.ge.f32.partialorder %v477, 0.0
  %vm664 = vcmp.ge.f32.partialorder %v482, 0.0
  %vm665 = vcmp.ge.f32.partialorder %v485, 0.0
  %vm666 = vcmp.ge.f32.partialorder %v490, 0.0
  %vm667 = vcmp.ge.f32.partialorder %v493, 0.0
  %vm668 = vcmp.ge.f32.partialorder %v498, 0.0
  %vm669 = vcmp.ge.f32.partialorder %v501, 0.0
  %vm670 = vcmp.ge.f32.partialorder %v506, 0.0
  %vm671 = vcmp.ge.f32.partialorder %v509, 0.0
  %vm672 = vcmp.ge.f32.partialorder %v514, 0.0
  %vm673 = vcmp.ge.f32.partialorder %v517, 0.0
  %vm674 = vcmp.ge.f32.partialorder %v522, 0.0
  %vm675 = vcmp.ge.f32.partialorder %v525, 0.0
  %vm676 = vcmp.ge.f32.partialorder %v530, 0.0
  %vm677 = vcmp.ge.f32.partialorder %v533, 0.0
  %vm678 = vcmp.ge.f32.partialorder %v538, 0.0
  %vm679 = vcmp.ge.f32.partialorder %v541, 0.0
  %vm680 = vcmp.ge.f32.partialorder %v546, 0.0
  %vm681 = vcmp.ge.f32.partialorder %v549, 0.0
  %vm682 = vcmp.ge.f32.partialorder %v554, 0.0
  %vm683 = vcmp.ge.f32.partialorder %v557, 0.0
  %vm684 = vcmp.ge.f32.partialorder %v562, 0.0
  %vm685 = vcmp.ge.f32.partialorder %v565, 0.0
  %vm686 = vcmp.ge.f32.partialorder %v570, 0.0
  %vm687 = vcmp.ge.f32.partialorder %v573, 0.0
  %vm688 = vcmp.ge.f32.partialorder %v578, 0.0
  %vm689 = vcmp.ge.f32.partialorder %v581, 0.0
  %vm690 = vcmp.ge.f32.partialorder %v586, 0.0
  %vm691 = vcmp.ge.f32.partialorder %v589, 0.0
  %vm692 = vcmp.ge.f32.partialorder %v594, 0.0
  %vm693 = vcmp.ge.f32.partialorder %v597, 0.0
  %vm694 = vcmp.ge.f32.partialorder %v602, 0.0
  %vm695 = vcmp.ge.f32.partialorder %v605, 0.0
  %vm696 = vcmp.ge.f32.partialorder %v610, 0.0
  %vm697 = vcmp.ge.f32.partialorder %v613, 0.0
  %vm698 = vcmp.ge.f32.partialorder %v618, 0.0
  %vm699 = vcmp.ge.f32.partialorder %v621, 0.0
  %vm700 = vcmp.ge.f32.partialorder %v626, 0.0
  %vm701 = vcmp.ge.f32.partialorder %v629, 0.0
  %vm702 = vcmp.ge.f32.partialorder %v634, 0.0
  %vm703 = vcmp.ge.f32.partialorder %v637, 0.0
  %v704 = vmul.f32 %v386, 0.2
  %v705 = vmul.f32 %v389, 0.2
  %v706 = vmul.f32 %v394, 0.2
  %v707 = vmul.f32 %v397, 0.2
  %v708 = vmul.f32 %v402, 0.2
  %v709 = vmul.f32 %v405, 0.2
  %v710 = vmul.f32 %v410, 0.2
  %v711 = vmul.f32 %v413, 0.2
  %v712 = vmul.f32 %v418, 0.2
  %v713 = vmul.f32 %v421, 0.2
  %v714 = vmul.f32 %v426, 0.2
  %v715 = vmul.f32 %v429, 0.2
  %v716 = vmul.f32 %v434, 0.2
  %v717 = vmul.f32 %v437, 0.2
  %v718 = vmul.f32 %v442, 0.2
  %v719 = vmul.f32 %v445, 0.2
  %v720 = vmul.f32 %v450, 0.2
  %v721 = vmul.f32 %v453, 0.2
  %v722 = vmul.f32 %v458, 0.2
  %v723 = vmul.f32 %v461, 0.2
  %v724 = vmul.f32 %v466, 0.2
  %v725 = vmul.f32 %v469, 0.2
  %v726 = vmul.f32 %v474, 0.2
  %v727 = vmul.f32 %v477, 0.2
  %v728 = vmul.f32 %v482, 0.2
  %v729 = vmul.f32 %v485, 0.2
  %v730 = vmul.f32 %v490, 0.2
  %v731 = vmul.f32 %v493, 0.2
  %v732 = vmul.f32 %v498, 0.2
  %v733 = vmul.f32 %v501, 0.2
  %v734 = vmul.f32 %v506, 0.2
  %v735 = vmul.f32 %v509, 0.2
  %v736 = vmul.f32 %v514, 0.2
  %v737 = vmul.f32 %v517, 0.2
  %v738 = vmul.f32 %v522, 0.2
  %v739 = vmul.f32 %v525, 0.2
  %v740 = vmul.f32 %v530, 0.2
  %v741 = vmul.f32 %v533, 0.2
  %v742 = vmul.f32 %v538, 0.2
  %v743 = vmul.f32 %v541, 0.2
  %v744 = vmul.f32 %v546, 0.2
  %v745 = vmul.f32 %v549, 0.2
  %v746 = vmul.f32 %v554, 0.2
  %v747 = vmul.f32 %v557, 0.2
  %v748 = vmul.f32 %v562, 0.2
  %v749 = vmul.f32 %v565, 0.2
  %v750 = vmul.f32 %v570, 0.2
  %v751 = vmul.f32 %v573, 0.2
  %v752 = vmul.f32 %v578, 0.2
  %v753 = vmul.f32 %v581, 0.2
  %v754 = vmul.f32 %v586, 0.2
  %v755 = vmul.f32 %v589, 0.2
  %v756 = vmul.f32 %v594, 0.2
  %v757 = vmul.f32 %v597, 0.2
  %v758 = vmul.f32 %v602, 0.2
  %v759 = vmul.f32 %v605, 0.2
  %v760 = vmul.f32 %v610, 0.2
  %v761 = vmul.f32 %v613, 0.2
  %v762 = vmul.f32 %v618, 0.2
  %v763 = vmul.f32 %v621, 0.2
  %v764 = vmul.f32 %v626, 0.2
  %v765 = vmul.f32 %v629, 0.2
  %v766 = vmul.f32 %v634, 0.2
  %v767 = vmul.f32 %v637, 0.2
  %v768 = vsel %vm640, %v386, %v704
  %v769 = vsel %vm641, %v389, %v705
  %v770 = vsel %vm642, %v394, %v706
  %v771 = vsel %vm643, %v397, %v707
  %v772 = vsel %vm644, %v402, %v708
  %v773 = vsel %vm645, %v405, %v709
  %v774 = vsel %vm646, %v410, %v710
  %v775 = vsel %vm647, %v413, %v711
  %v776 = vsel %vm648, %v418, %v712
  %v777 = vsel %vm649, %v421, %v713
  %v778 = vsel %vm650, %v426, %v714
  %v779 = vsel %vm651, %v429, %v715
  %v780 = vsel %vm652, %v434, %v716
  %v781 = vsel %vm653, %v437, %v717
  %v782 = vsel %vm654, %v442, %v718
  %v783 = vsel %vm655, %v445, %v719
  %v784 = vsel %vm656, %v450, %v720
  %v785 = vsel %vm657, %v453, %v721
  %v786 = vsel %vm658, %v458, %v722
  %v787 = vsel %vm659, %v461, %v723
  %v788 = vsel %vm660, %v466, %v724
  %v789 = vsel %vm661, %v469, %v725
  %v790 = vsel %vm662, %v474, %v726
  %v791 = vsel %vm663, %v477, %v727
  %v792 = vsel %vm664, %v482, %v728
  %v793 = vsel %vm665, %v485, %v729
  %v794 = vsel %vm666, %v490, %v730
  %v795 = vsel %vm667, %v493, %v731
  %v796 = vsel %vm668, %v498, %v732
  %v797 = vsel %vm669, %v501, %v733
  %v798 = vsel %vm670, %v506, %v734
  %v799 = vsel %vm671, %v509, %v735
  %v800 = vsel %vm672, %v514, %v736
  %v801 = vsel %vm673, %v517, %v737
  %v802 = vsel %vm674, %v522, %v738
  %v803 = vsel %vm675, %v525, %v739
  %v804 = vsel %vm676, %v530, %v740
  %v805 = vsel %vm677, %v533, %v741
  %v806 = vsel %vm678, %v538, %v742
  %v807 = vsel %vm679, %v541, %v743
  %v808 = vsel %vm680, %v546, %v744
  %v809 = vsel %vm681, %v549, %v745
  %v810 = vsel %vm682, %v554, %v746
  %v811 = vsel %vm683, %v557, %v747
  %v812 = vsel %vm684, %v562, %v748
  %v813 = vsel %vm685, %v565, %v749
  %v814 = vsel %vm686, %v570, %v750
  %v815 = vsel %vm687, %v573, %v751
  %v816 = vsel %vm688, %v578, %v752
  %v817 = vsel %vm689, %v581, %v753
  %v818 = vsel %vm690, %v586, %v754
  %v819 = vsel %vm691, %v589, %v755
  %v820 = vsel %vm692, %v594, %v756
  %v821 = vsel %vm693, %v597, %v757
  %v822 = vsel %vm694, %v602, %v758
  %v823 = vsel %vm695, %v605, %v759
  %v824 = vsel %vm696, %v610, %v760
  %v825 = vsel %vm697, %v613, %v761
  %v826 = vsel %vm698, %v618, %v762
  %v827 = vsel %vm699, %v621, %v763
  %v828 = vsel %vm700, %v626, %v764
  %v829 = vsel %vm701, %v629, %v765
  %v830 = vsel %vm702, %v634, %v766
  %v831 = vsel %vm703, %v637, %v767
  %vm832 = vcmask 64512
  %833 = vst.msk [vmem:[%s3] sm:$0xff] %vm832, %v768
  %834 = vst.msk [vmem:[%s3 + $0x8] sm:$0xff] %vm832, %v769
  %835 = vst.msk [vmem:[%s3 + $0x10] sm:$0xff] %vm832, %v770
  %836 = vst.msk [vmem:[%s3 + $0x18] sm:$0xff] %vm832, %v771
  %837 = vst.msk [vmem:[%s3 + $0x20] sm:$0xff] %vm832, %v772
  %838 = vst.msk [vmem:[%s3 + $0x28] sm:$0xff] %vm832, %v773
  %839 = vst.msk [vmem:[%s3 + $0x30] sm:$0xff] %vm832, %v774
  %840 = vst.msk [vmem:[%s3 + $0x38] sm:$0xff] %vm832, %v775
  %841 = vst.msk [vmem:[%s3 + $0x40] sm:$0xff] %vm832, %v776
  %842 = vst.msk [vmem:[%s3 + $0x48] sm:$0xff] %vm832, %v777
  %843 = vst.msk [vmem:[%s3 + $0x50] sm:$0xff] %vm832, %v778
  %844 = vst.msk [vmem:[%s3 + $0x58] sm:$0xff] %vm832, %v779
  %845 = vst.msk [vmem:[%s3 + $0x60] sm:$0xff] %vm832, %v780
  %846 = vst.msk [vmem:[%s3 + $0x68] sm:$0xff] %vm832, %v781
  %847 = vst.msk [vmem:[%s3 + $0x70] sm:$0xff] %vm832, %v782
  %848 = vst.msk [vmem:[%s3 + $0x78] sm:$0xff] %vm832, %v783
  %849 = vst.msk [vmem:[%s3 + $0x80] sm:$0xff] %vm832, %v784
  %850 = vst.msk [vmem:[%s3 + $0x88] sm:$0xff] %vm832, %v785
  %851 = vst.msk [vmem:[%s3 + $0x90] sm:$0xff] %vm832, %v786
  %852 = vst.msk [vmem:[%s3 + $0x98] sm:$0xff] %vm832, %v787
  %853 = vst.msk [vmem:[%s3 + $0xa0] sm:$0xff] %vm832, %v788
  %854 = vst.msk [vmem:[%s3 + $0xa8] sm:$0xff] %vm832, %v789
  %855 = vst.msk [vmem:[%s3 + $0xb0] sm:$0xff] %vm832, %v790
  %856 = vst.msk [vmem:[%s3 + $0xb8] sm:$0xff] %vm832, %v791
  %857 = vst.msk [vmem:[%s3 + $0xc0] sm:$0xff] %vm832, %v792
  %858 = vst.msk [vmem:[%s3 + $0xc8] sm:$0xff] %vm832, %v793
  %859 = vst.msk [vmem:[%s3 + $0xd0] sm:$0xff] %vm832, %v794
  %860 = vst.msk [vmem:[%s3 + $0xd8] sm:$0xff] %vm832, %v795
  %861 = vst.msk [vmem:[%s3 + $0xe0] sm:$0xff] %vm832, %v796
  %862 = vst.msk [vmem:[%s3 + $0xe8] sm:$0xff] %vm832, %v797
  %863 = vst.msk [vmem:[%s3 + $0xf0] sm:$0xff] %vm832, %v798
  %864 = vst.msk [vmem:[%s3 + $0xf8] sm:$0xff] %vm832, %v799
  %865 = vst.msk [vmem:[%s3 + $0x100] sm:$0xff] %vm832, %v800
  %866 = vst.msk [vmem:[%s3 + $0x108] sm:$0xff] %vm832, %v801
  %867 = vst.msk [vmem:[%s3 + $0x110] sm:$0xff] %vm832, %v802
  %868 = vst.msk [vmem:[%s3 + $0x118] sm:$0xff] %vm832, %v803
  %869 = vst.msk [vmem:[%s3 + $0x120] sm:$0xff] %vm832, %v804
  %870 = vst.msk [vmem:[%s3 + $0x128] sm:$0xff] %vm832, %v805
  %871 = vst.msk [vmem:[%s3 + $0x130] sm:$0xff] %vm832, %v806
  %872 = vst.msk [vmem:[%s3 + $0x138] sm:$0xff] %vm832, %v807
  %873 = vst.msk [vmem:[%s3 + $0x140] sm:$0xff] %vm832, %v808
  %874 = vst.msk [vmem:[%s3 + $0x148] sm:$0xff] %vm832, %v809
  %875 = vst.msk [vmem:[%s3 + $0x150] sm:$0xff] %vm832, %v810
  %876 = vst.msk [vmem:[%s3 + $0x158] sm:$0xff] %vm832, %v811
  %877 = vst.msk [vmem:[%s3 + $0x160] sm:$0xff] %vm832, %v812
  %878 = vst.msk [vmem:[%s3 + $0x168] sm:$0xff] %vm832, %v813
  %879 = vst.msk [vmem:[%s3 + $0x170] sm:$0xff] %vm832, %v814
  %880 = vst.msk [vmem:[%s3 + $0x178] sm:$0xff] %vm832, %v815
  %881 = vst.msk [vmem:[%s3 + $0x180] sm:$0xff] %vm832, %v816
  %882 = vst.msk [vmem:[%s3 + $0x188] sm:$0xff] %vm832, %v817
  %883 = vst.msk [vmem:[%s3 + $0x190] sm:$0xff] %vm832, %v818
  %884 = vst.msk [vmem:[%s3 + $0x198] sm:$0xff] %vm832, %v819
  %885 = vst.msk [vmem:[%s3 + $0x1a0] sm:$0xff] %vm832, %v820
  %886 = vst.msk [vmem:[%s3 + $0x1a8] sm:$0xff] %vm832, %v821
  %887 = vst.msk [vmem:[%s3 + $0x1b0] sm:$0xff] %vm832, %v822
  %888 = vst.msk [vmem:[%s3 + $0x1b8] sm:$0xff] %vm832, %v823
  %889 = vst.msk [vmem:[%s3 + $0x1c0] sm:$0xff] %vm832, %v824
  %890 = vst.msk [vmem:[%s3 + $0x1c8] sm:$0xff] %vm832, %v825
  %891 = vst.msk [vmem:[%s3 + $0x1d0] sm:$0xff] %vm832, %v826
  %892 = vst.msk [vmem:[%s3 + $0x1d8] sm:$0xff] %vm832, %v827
  %893 = vst.msk [vmem:[%s3 + $0x1e0] sm:$0xff] %vm832, %v828
  %894 = vst.msk [vmem:[%s3 + $0x1e8] sm:$0xff] %vm832, %v829
  %895 = vst.msk [vmem:[%s3 + $0x1f0] sm:$0xff] %vm832, %v830
  %896 = vst.msk [vmem:[%s3 + $0x1f8] sm:$0xff] %vm832, %v831
  // Predicated region
  $region14: #{_lambda_.5} parent=0 // pred_check
    _
  $region15: #{_lambda_.5} parent=0 // pred_check_branch
    %898 = sbr.rel (0) target = $region17
  $region16: #{_lambda_.5} parent=0 // pred_region
    _
  $region17: #{_lambda_.5} parent=0 // pred_fallthru
    _
  // Predicated region
  $region18: #{_lambda_.5} parent=0 // pred_check
    _
  $region19: #{_lambda_.5} parent=0 // pred_check_branch
    %900 = sbr.rel (0) target = $region21
  $region20: #{_lambda_.5} parent=0 // pred_region
    _
  $region21: #{_lambda_.5} parent=0 // pred_fallthru
    _

// kernel: _lambda_.6
$region0: #{_lambda_.6}
  #allocation0 [shape = 'u32[]', space=smem, size = 0x4, offset = 0x4, fixed_abs, tag = 'smem constant byte address 0x4 - core index']
  #allocation1 [shape = 'u32[144,128]{1,0:T(1,128)}', space=vmem, size = 0x12000, scoped, tag = 'internal scratch']
  %s0 = inlined_call_operand.vmem [shape: bf16[128,128], index: 0, kind: input, shape index: {}]
  %s1 = inlined_call_operand.vmem [shape: bf16[128,16], index: 1, kind: input, shape index: {}]
  %s2 = inlined_call_operand.vmem [shape: f32[1,16], index: 2, kind: input, shape index: {}]
  %s3 = inlined_call_operand.vmem [shape: f32[1,16], index: 3, kind: input, shape index: {}]
  %s4 = inlined_call_operand.vmem [shape: f32[128,16], index: 4, kind: output, shape index: {}]
  %s5 = sld [smem:[#allocation0]]
  $region26: #{_lambda_.6} parent=0
    _
  %s7 = ssub.s32 1, %s5
  %s8 = scalar_select 0, %s7, %s5
  // Predicated region
  $region2: #{_lambda_.6} parent=0 // pred_check
    _
  $region3: #{_lambda_.6} parent=0 // pred_check_branch
    %10 = sbr.rel (0) target = $region5
  $region4: #{_lambda_.6} parent=0 // pred_region
    _
  $region5: #{_lambda_.6} parent=0 // pred_fallthru
    _
  // Predicated region
  $region6: #{_lambda_.6} parent=0 // pred_check
    _
  $region7: #{_lambda_.6} parent=0 // pred_check_branch
    %12 = sbr.rel (0) target = $region9
  $region8: #{_lambda_.6} parent=0 // pred_region
    _
  $region9: #{_lambda_.6} parent=0 // pred_fallthru
    _
  // Predicated region
  $region10: #{_lambda_.6} parent=0 // pred_check
    _
  $region11: #{_lambda_.6} parent=0 // pred_check_branch
    %14 = sbr.rel (0) target = $region13
  $region12: #{_lambda_.6} parent=0 // pred_region
    _
  $region13: #{_lambda_.6} parent=0 // pred_fallthru
    _
  // Predicated region
  $region14: #{_lambda_.6} parent=0 // pred_check
    _
  $region15: #{_lambda_.6} parent=0 // pred_check_branch
    %16 = sbr.rel (0) target = $region17
  $region16: #{_lambda_.6} parent=0 // pred_region
    _
  $region17: #{_lambda_.6} parent=0 // pred_fallthru
    _
  %v18 = vld [vmem:[%s0] sm:$0xf]
  %v19 = vld [vmem:[%s0 + $0x4] sm:$0xf]
  %v20 = vld [vmem:[%s0 + $0x8] sm:$0xf]
  %v21 = vld [vmem:[%s0 + $0xc] sm:$0xf]
  %v22 = vld [vmem:[%s0 + $0x10] sm:$0xf]
  %v23 = vld [vmem:[%s0 + $0x14] sm:$0xf]
  %v24 = vld [vmem:[%s0 + $0x18] sm:$0xf]
  %v25 = vld [vmem:[%s0 + $0x1c] sm:$0xf]
  %v26 = vld [vmem:[%s0 + $0x20] sm:$0xf]
  %v27 = vld [vmem:[%s0 + $0x24] sm:$0xf]
  %v28 = vld [vmem:[%s0 + $0x28] sm:$0xf]
  %v29 = vld [vmem:[%s0 + $0x2c] sm:$0xf]
  %v30 = vld [vmem:[%s0 + $0x30] sm:$0xf]
  %v31 = vld [vmem:[%s0 + $0x34] sm:$0xf]
  %v32 = vld [vmem:[%s0 + $0x38] sm:$0xf]
  %v33 = vld [vmem:[%s0 + $0x3c] sm:$0xf]
  %v34 = vld [vmem:[%s1] sm:$0xf]
  %v35 = vld [vmem:[%s1 + $0x4] sm:$0xf]
  %v36 = vld [vmem:[%s1 + $0x8] sm:$0xf]
  %v37 = vld [vmem:[%s1 + $0xc] sm:$0xf]
  %v38 = vld [vmem:[%s1 + $0x10] sm:$0xf]
  %v39 = vld [vmem:[%s1 + $0x14] sm:$0xf]
  %v40 = vld [vmem:[%s1 + $0x18] sm:$0xf]
  %v41 = vld [vmem:[%s1 + $0x1c] sm:$0xf]
  %v42 = vld [vmem:[%s1 + $0x20] sm:$0xf]
  %v43 = vld [vmem:[%s1 + $0x24] sm:$0xf]
  %v44 = vld [vmem:[%s1 + $0x28] sm:$0xf]
  %v45 = vld [vmem:[%s1 + $0x2c] sm:$0xf]
  %v46 = vld [vmem:[%s1 + $0x30] sm:$0xf]
  %v47 = vld [vmem:[%s1 + $0x34] sm:$0xf]
  %v48 = vld [vmem:[%s1 + $0x38] sm:$0xf]
  %v49 = vld [vmem:[%s1 + $0x3c] sm:$0xf]
  %v66 = vunpack.c.l.b16 %v18
  %v67 = vunpack.c.l.b16 %v19
  %v68 = vunpack.c.l.b16 %v20
  %v69 = vunpack.c.l.b16 %v21
  %v70 = vunpack.c.l.b16 %v22
  %v71 = vunpack.c.l.b16 %v23
  %v72 = vunpack.c.l.b16 %v24
  %v73 = vunpack.c.l.b16 %v25
  %v74 = vunpack.c.l.b16 %v26
  %v75 = vunpack.c.l.b16 %v27
  %v76 = vunpack.c.l.b16 %v28
  %v77 = vunpack.c.l.b16 %v29
  %v78 = vunpack.c.l.b16 %v30
  %v79 = vunpack.c.l.b16 %v31
  %v80 = vunpack.c.l.b16 %v32
  %v81 = vunpack.c.l.b16 %v33
  %v82 = vpack.c.b16 %v67, %v66
  %v83 = vpack.c.b16 %v69, %v68
  %v84 = vpack.c.b16 %v71, %v70
  %v85 = vpack.c.b16 %v73, %v72
  %v86 = vpack.c.b16 %v75, %v74
  %v87 = vpack.c.b16 %v77, %v76
  %v88 = vpack.c.b16 %v79, %v78
  %v89 = vpack.c.b16 %v81, %v80
  %v114 = vunpack.c.l.b16 %v34
  %v115 = vunpack.c.l.b16 %v35
  %v116 = vunpack.c.l.b16 %v36
  %v117 = vunpack.c.l.b16 %v37
  %v118 = vunpack.c.l.b16 %v38
  %v119 = vunpack.c.l.b16 %v39
  %v120 = vunpack.c.l.b16 %v40
  %v121 = vunpack.c.l.b16 %v41
  %v122 = vunpack.c.l.b16 %v42
  %v123 = vunpack.c.l.b16 %v43
  %v124 = vunpack.c.l.b16 %v44
  %v125 = vunpack.c.l.b16 %v45
  %v126 = vunpack.c.l.b16 %v46
  %v127 = vunpack.c.l.b16 %v47
  %v128 = vunpack.c.l.b16 %v48
  %v129 = vunpack.c.l.b16 %v49
  %v130 = vpack.c.b16 %v115, %v114
  %v131 = vpack.c.b16 %v117, %v116
  %v132 = vpack.c.b16 %v119, %v118
  %v133 = vpack.c.b16 %v121, %v120
  %v134 = vpack.c.b16 %v123, %v122
  %v135 = vpack.c.b16 %v125, %v124
  %v136 = vpack.c.b16 %v127, %v126
  %v137 = vpack.c.b16 %v129, %v128
  %146 = vmatprep.subr.bf16.mxu0 0
  %147 = vmatpush1.bf16.msra.mxu0 %v130
  %148 = vmatprep.subr.bf16.mxu0 0
  %149 = vmatpush1.bf16.msra.mxu0 %v131
  %150 = vmatprep.subr.bf16.mxu0 0
  %151 = vmatpush1.bf16.msra.mxu0 %v132
  %152 = vmatprep.subr.bf16.mxu0 0
  %153 = vmatpush1.bf16.msra.mxu0 %v133
  %154 = vmatprep.subr.bf16.mxu0 0
  %155 = vmatpush1.bf16.msra.mxu0 %v134
  %156 = vmatprep.subr.bf16.mxu0 0
  %157 = vmatpush1.bf16.msra.mxu0 %v135
  %158 = vmatprep.subr.bf16.mxu0 0
  %159 = vmatpush1.bf16.msra.mxu0 %v136
  %160 = vmatprep.subr.bf16.mxu0 0
  %161 = vmatpush1.bf16.msra.mxu0 %v137
  %162 = vmatprep.subr.bf16.mxu0 0
  %163 = vmatpush1.bf16.msra.mxu0 0
  %164 = vmatprep.subr.bf16.mxu0 0
  %165 = vmatpush1.bf16.msra.mxu0 0
  %166 = vmatprep.subr.bf16.mxu0 0
  %167 = vmatpush1.bf16.msra.mxu0 0
  %168 = vmatprep.subr.bf16.mxu0 0
  %169 = vmatpush1.bf16.msra.mxu0 0
  %170 = vmatprep.subr.bf16.mxu0 0
  %171 = vmatpush1.bf16.msra.mxu0 0
  %172 = vmatprep.subr.bf16.mxu0 0
  %173 = vmatpush1.bf16.msra.mxu0 0
  %174 = vmatprep.subr.bf16.mxu0 0
  %175 = vmatpush1.bf16.msra.mxu0 0
  %176 = vmatprep.subr.bf16.mxu0 0
  %177 = vmatpush1.bf16.msra.mxu0 0
  %178 = vmatprep.mubr.bf16.mxu0 0
  %179 = vmatmul.mubr.bf16.gmra.mrb[0].mxu0 %v82
  %v180 = vpop.f32.mrb[0].mxu0
  %v181 = vadd.f32 0.0, %v180
  %v182 = vpop.f32.mrb[0].mxu0
  %v183 = vpop.f32.mrb[0].mxu0
  %v184 = vadd.f32 0.0, %v183
  %v185 = vpop.f32.mrb[0].mxu0
  %186 = vmatprep.mubr.bf16.mxu0 0
  %187 = vmatmul.mubr.bf16.gmra.mrb[0].mxu0 %v83
  %v188 = vpop.f32.mrb[0].mxu0
  %v189 = vadd.f32 0.0, %v188
  %v190 = vpop.f32.mrb[0].mxu0
  %v191 = vpop.f32.mrb[0].mxu0
  %v192 = vadd.f32 0.0, %v191
  %v193 = vpop.f32.mrb[0].mxu0
  %194 = vmatprep.mubr.bf16.mxu0 0
  %195 = vmatmul.mubr.bf16.gmra.mrb[0].mxu0 %v84
  %v196 = vpop.f32.mrb[0].mxu0
  %v197 = vadd.f32 0.0, %v196
  %v198 = vpop.f32.mrb[0].mxu0
  %v199 = vpop.f32.mrb[0].mxu0
  %v200 = vadd.f32 0.0, %v199
  %v201 = vpop.f32.mrb[0].mxu0
  %202 = vmatprep.mubr.bf16.mxu0 0
  %203 = vmatmul.mubr.bf16.gmra.mrb[0].mxu0 %v85
  %v204 = vpop.f32.mrb[0].mxu0
  %v205 = vadd.f32 0.0, %v204
  %v206 = vpop.f32.mrb[0].mxu0
  %v207 = vpop.f32.mrb[0].mxu0
  %v208 = vadd.f32 0.0, %v207
  %v209 = vpop.f32.mrb[0].mxu0
  %210 = vmatprep.mubr.bf16.mxu0 0
  %211 = vmatmul.mubr.bf16.gmra.mrb[0].mxu0 %v86
  %v212 = vpop.f32.mrb[0].mxu0
  %v213 = vadd.f32 0.0, %v212
  %v214 = vpop.f32.mrb[0].mxu0
  %v215 = vpop.f32.mrb[0].mxu0
  %v216 = vadd.f32 0.0, %v215
  %v217 = vpop.f32.mrb[0].mxu0
  %218 = vmatprep.mubr.bf16.mxu0 0
  %219 = vmatmul.mubr.bf16.gmra.mrb[0].mxu0 %v87
  %v220 = vpop.f32.mrb[0].mxu0
  %v221 = vadd.f32 0.0, %v220
  %v222 = vpop.f32.mrb[0].mxu0
  %v223 = vpop.f32.mrb[0].mxu0
  %v224 = vadd.f32 0.0, %v223
  %v225 = vpop.f32.mrb[0].mxu0
  %226 = vmatprep.mubr.bf16.mxu0 0
  %227 = vmatmul.mubr.bf16.gmra.mrb[0].mxu0 %v88
  %v228 = vpop.f32.mrb[0].mxu0
  %v229 = vadd.f32 0.0, %v228
  %v230 = vpop.f32.mrb[0].mxu0
  %v231 = vpop.f32.mrb[0].mxu0
  %v232 = vadd.f32 0.0, %v231
  %v233 = vpop.f32.mrb[0].mxu0
  %234 = vmatprep.mubr.bf16.mxu0 0
  %235 = vmatmul.mubr.bf16.gmra.mrb[0].mxu0 %v89
  %v236 = vpop.f32.mrb[0].mxu0
  %v237 = vadd.f32 0.0, %v236
  %v238 = vpop.f32.mrb[0].mxu0
  %v239 = vpop.f32.mrb[0].mxu0
  %v240 = vadd.f32 0.0, %v239
  %v241 = vpop.f32.mrb[0].mxu0
  %242 = vdwg.mxu0
  %vm243 = vcmask 130048
  %v244 = vsel %vm243, %v181, 0.0
  %v245 = vsel %vm243, %v184, 0.0
  %v246 = vadd.f32 %v244, %v245
  %v247 = vsel %vm243, %v189, 0.0
  %v248 = vadd.f32 %v246, %v247
  %v249 = vsel %vm243, %v192, 0.0
  %v250 = vadd.f32 %v248, %v249
  %v251 = vsel %vm243, %v197, 0.0
  %v252 = vadd.f32 %v250, %v251
  %v253 = vsel %vm243, %v200, 0.0
  %v254 = vadd.f32 %v252, %v253
  %v255 = vsel %vm243, %v205, 0.0
  %v256 = vadd.f32 %v254, %v255
  %v257 = vsel %vm243, %v208, 0.0
  %v258 = vadd.f32 %v256, %v257
  %v259 = vsel %vm243, %v213, 0.0
  %v260 = vadd.f32 %v258, %v259
  %v261 = vsel %vm243, %v216, 0.0
  %v262 = vadd.f32 %v260, %v261
  %v263 = vsel %vm243, %v221, 0.0
  %v264 = vadd.f32 %v262, %v263
  %v265 = vsel %vm243, %v224, 0.0
  %v266 = vadd.f32 %v264, %v265
  %v267 = vsel %vm243, %v229, 0.0
  %v268 = vadd.f32 %v266, %v267
  %v269 = vsel %vm243, %v232, 0.0
  %v270 = vadd.f32 %v268, %v269
  %v271 = vsel %vm243, %v237, 0.0
  %v272 = vadd.f32 %v270, %v271
  %v273 = vsel %vm243, %v240, 0.0
  %v274 = vadd.f32 %v272, %v273
  %v275 = vrot.slane %v274, 4
  %v276 = vadd.f32 %v274, %v275
  %v277 = vrot.slane %v276, 2
  %v278 = vadd.f32 %v276, %v277
  %v279 = vrot.slane %v278, 1
  %v280 = vadd.f32 %v278, %v279
  %v281 = vrcp.pop 128.0
  %v282 = vmul.f32 %v280, %v281
  %v283 = vsub.f32 %v181, %v282
  %v284 = vsub.f32 %v184, %v282
  %v285 = vsub.f32 %v189, %v282
  %v286 = vsub.f32 %v192, %v282
  %v287 = vsub.f32 %v197, %v282
  %v288 = vsub.f32 %v200, %v282
  %v289 = vsub.f32 %v205, %v282
  %v290 = vsub.f32 %v208, %v282
  %v291 = vsub.f32 %v213, %v282
  %v292 = vsub.f32 %v216, %v282
  %v293 = vsub.f32 %v221, %v282
  %v294 = vsub.f32 %v224, %v282
  %v295 = vsub.f32 %v229, %v282
  %v296 = vsub.f32 %v232, %v282
  %v297 = vsub.f32 %v237, %v282
  %v298 = vsub.f32 %v240, %v282
  %v299 = vmul.f32 %v283, %v283
  %v300 = vmul.f32 %v284, %v284
  %v301 = vmul.f32 %v285, %v285
  %v302 = vmul.f32 %v286, %v286
  %v303 = vmul.f32 %v287, %v287
  %v304 = vmul.f32 %v288, %v288
  %v305 = vmul.f32 %v289, %v289
  %v306 = vmul.f32 %v290, %v290
  %v307 = vmul.f32 %v291, %v291
  %v308 = vmul.f32 %v292, %v292
  %v309 = vmul.f32 %v293, %v293
  %v310 = vmul.f32 %v294, %v294
  %v311 = vmul.f32 %v295, %v295
  %v312 = vmul.f32 %v296, %v296
  %v313 = vmul.f32 %v297, %v297
  %v314 = vmul.f32 %v298, %v298
  %v315 = vsel %vm243, %v299, 0.0
  %v316 = vsel %vm243, %v300, 0.0
  %v317 = vadd.f32 %v315, %v316
  %v318 = vsel %vm243, %v301, 0.0
  %v319 = vadd.f32 %v317, %v318
  %v320 = vsel %vm243, %v302, 0.0
  %v321 = vadd.f32 %v319, %v320
  %v322 = vsel %vm243, %v303, 0.0
  %v323 = vadd.f32 %v321, %v322
  %v324 = vsel %vm243, %v304, 0.0
  %v325 = vadd.f32 %v323, %v324
  %v326 = vsel %vm243, %v305, 0.0
  %v327 = vadd.f32 %v325, %v326
  %v328 = vsel %vm243, %v306, 0.0
  %v329 = vadd.f32 %v327, %v328
  %v330 = vsel %vm243, %v307, 0.0
  %v331 = vadd.f32 %v329, %v330
  %v332 = vsel %vm243, %v308, 0.0
  %v333 = vadd.f32 %v331, %v332
  %v334 = vsel %vm243, %v309, 0.0
  %v335 = vadd.f32 %v333, %v334
  %v336 = vsel %vm243, %v310, 0.0
  %v337 = vadd.f32 %v335, %v336
  %v338 = vsel %vm243, %v311, 0.0
  %v339 = vadd.f32 %v337, %v338
  %v340 = vsel %vm243, %v312, 0.0
  %v341 = vadd.f32 %v339, %v340
  %v342 = vsel %vm243, %v313, 0.0
  %v343 = vadd.f32 %v341, %v342
  %v344 = vsel %vm243, %v314, 0.0
  %v345 = vadd.f32 %v343, %v344
  %v346 = vrot.slane %v345, 4
  %v347 = vadd.f32 %v345, %v346
  %v348 = vrot.slane %v347, 2
  %v349 = vadd.f32 %v347, %v348
  %v350 = vrot.slane %v349, 1
  %v351 = vadd.f32 %v349, %v350
  %v352 = vmul.f32 %v351, %v281
  %v353 = vld [vmem:[%s2] sm:$0x1]
  %v354 = vadd.f32 %v352, 1e-05
  %v355 = vrsqrt.pop %v354
  %v356 = vmul.f32 %v353, %v355
  %v358 = vlaneseq
  %v359 = vshrl.u32 %v358, 7
  %v360 = vsub.s32 0, %v359
  %v361 = vrot.slane %v356, %v360
  %v363 = vmul.f32 %v283, %v361
  %v364 = vmul.f32 %v284, %v361
  %v365 = vmul.f32 %v285, %v361
  %v366 = vmul.f32 %v286, %v361
  %v367 = vmul.f32 %v287, %v361
  %v368 = vmul.f32 %v288, %v361
  %v369 = vmul.f32 %v289, %v361
  %v370 = vmul.f32 %v290, %v361
  %v371 = vmul.f32 %v291, %v361
  %v372 = vmul.f32 %v292, %v361
  %v373 = vmul.f32 %v293, %v361
  %v374 = vmul.f32 %v294, %v361
  %v375 = vmul.f32 %v295, %v361
  %v376 = vmul.f32 %v296, %v361
  %v377 = vmul.f32 %v297, %v361
  %v378 = vmul.f32 %v298, %v361
  %v379 = vld [vmem:[%s3] sm:$0x1]
  %v381 = vlaneseq
  %v382 = vshrl.u32 %v381, 7
  %v383 = vsub.s32 0, %v382
  %v384 = vrot.slane %v379, %v383
  %v386 = vadd.f32 %v363, %v384
  %v387 = vadd.f32 %v364, %v384
  %v388 = vadd.f32 %v365, %v384
  %v389 = vadd.f32 %v366, %v384
  %v390 = vadd.f32 %v367, %v384
  %v391 = vadd.f32 %v368, %v384
  %v392 = vadd.f32 %v369, %v384
  %v393 = vadd.f32 %v370, %v384
  %v394 = vadd.f32 %v371, %v384
  %v395 = vadd.f32 %v372, %v384
  %v396 = vadd.f32 %v373, %v384
  %v397 = vadd.f32 %v374, %v384
  %v398 = vadd.f32 %v375, %v384
  %v399 = vadd.f32 %v376, %v384
  %v400 = vadd.f32 %v377, %v384
  %v401 = vadd.f32 %v378, %v384
  %vm402 = vcmp.ge.f32.partialorder %v386, 0.0
  %vm403 = vcmp.ge.f32.partialorder %v387, 0.0
  %vm404 = vcmp.ge.f32.partialorder %v388, 0.0
  %vm405 = vcmp.ge.f32.partialorder %v389, 0.0
  %vm406 = vcmp.ge.f32.partialorder %v390, 0.0
  %vm407 = vcmp.ge.f32.partialorder %v391, 0.0
  %vm408 = vcmp.ge.f32.partialorder %v392, 0.0
  %vm409 = vcmp.ge.f32.partialorder %v393, 0.0
  %vm410 = vcmp.ge.f32.partialorder %v394, 0.0
  %vm411 = vcmp.ge.f32.partialorder %v395, 0.0
  %vm412 = vcmp.ge.f32.partialorder %v396, 0.0
  %vm413 = vcmp.ge.f32.partialorder %v397, 0.0
  %vm414 = vcmp.ge.f32.partialorder %v398, 0.0
  %vm415 = vcmp.ge.f32.partialorder %v399, 0.0
  %vm416 = vcmp.ge.f32.partialorder %v400, 0.0
  %vm417 = vcmp.ge.f32.partialorder %v401, 0.0
  %v418 = vmul.f32 %v386, 0.2
  %v419 = vmul.f32 %v387, 0.2
  %v420 = vmul.f32 %v388, 0.2
  %v421 = vmul.f32 %v389, 0.2
  %v422 = vmul.f32 %v390, 0.2
  %v423 = vmul.f32 %v391, 0.2
  %v424 = vmul.f32 %v392, 0.2
  %v425 = vmul.f32 %v393, 0.2
  %v426 = vmul.f32 %v394, 0.2
  %v427 = vmul.f32 %v395, 0.2
  %v428 = vmul.f32 %v396, 0.2
  %v429 = vmul.f32 %v397, 0.2
  %v430 = vmul.f32 %v398, 0.2
  %v431 = vmul.f32 %v399, 0.2
  %v432 = vmul.f32 %v400, 0.2
  %v433 = vmul.f32 %v401, 0.2
  %v434 = vsel %vm402, %v386, %v418
  %v435 = vsel %vm403, %v387, %v419
  %v436 = vsel %vm404, %v388, %v420
  %v437 = vsel %vm405, %v389, %v421
  %v438 = vsel %vm406, %v390, %v422
  %v439 = vsel %vm407, %v391, %v423
  %v440 = vsel %vm408, %v392, %v424
  %v441 = vsel %vm409, %v393, %v425
  %v442 = vsel %vm410, %v394, %v426
  %v443 = vsel %vm411, %v395, %v427
  %v444 = vsel %vm412, %v396, %v428
  %v445 = vsel %vm413, %v397, %v429
  %v446 = vsel %vm414, %v398, %v430
  %v447 = vsel %vm415, %v399, %v431
  %v448 = vsel %vm416, %v400, %v432
  %v449 = vsel %vm417, %v401, %v433
  %450 = vst.msk [vmem:[%s4] sm:$0xff] %vm243, %v434
  %451 = vst.msk [vmem:[%s4 + $0x8] sm:$0xff] %vm243, %v435
  %452 = vst.msk [vmem:[%s4 + $0x10] sm:$0xff] %vm243, %v436
  %453 = vst.msk [vmem:[%s4 + $0x18] sm:$0xff] %vm243, %v437
  %454 = vst.msk [vmem:[%s4 + $0x20] sm:$0xff] %vm243, %v438
  %455 = vst.msk [vmem:[%s4 + $0x28] sm:$0xff] %vm243, %v439
  %456 = vst.msk [vmem:[%s4 + $0x30] sm:$0xff] %vm243, %v440
  %457 = vst.msk [vmem:[%s4 + $0x38] sm:$0xff] %vm243, %v441
  %458 = vst.msk [vmem:[%s4 + $0x40] sm:$0xff] %vm243, %v442
  %459 = vst.msk [vmem:[%s4 + $0x48] sm:$0xff] %vm243, %v443
  %460 = vst.msk [vmem:[%s4 + $0x50] sm:$0xff] %vm243, %v444
  %461 = vst.msk [vmem:[%s4 + $0x58] sm:$0xff] %vm243, %v445
  %462 = vst.msk [vmem:[%s4 + $0x60] sm:$0xff] %vm243, %v446
  %463 = vst.msk [vmem:[%s4 + $0x68] sm:$0xff] %vm243, %v447
  %464 = vst.msk [vmem:[%s4 + $0x70] sm:$0xff] %vm243, %v448
  %465 = vst.msk [vmem:[%s4 + $0x78] sm:$0xff] %vm243, %v449
  // Predicated region
  $region18: #{_lambda_.6} parent=0 // pred_check
    _
  $region19: #{_lambda_.6} parent=0 // pred_check_branch
    %467 = sbr.rel (0) target = $region21
  $region20: #{_lambda_.6} parent=0 // pred_region
    _
  $region21: #{_lambda_.6} parent=0 // pred_fallthru
    _
  // Predicated region
  $region22: #{_lambda_.6} parent=0 // pred_check
    _
  $region23: #{_lambda_.6} parent=0 // pred_check_branch
    %469 = sbr.rel (0) target = $region25
  $region24: #{_lambda_.6} parent=0 // pred_region
    _
  $region25: #{_lambda_.6} parent=0 // pred_fallthru
    _

// kernel: _lambda_.7
$region0: #{_lambda_.7}
  #allocation0 [shape = 'u32[]', space=smem, size = 0x4, offset = 0x4, fixed_abs, tag = 'smem constant byte address 0x4 - core index']
  #allocation1 [shape = 'u32[144,128]{1,0:T(1,128)}', space=vmem, size = 0x12000, scoped, tag = 'internal scratch']
  %s0 = inlined_call_operand.vmem [shape: bf16[32,256], index: 0, kind: input, shape index: {}]
  %s1 = inlined_call_operand.vmem [shape: bf16[256,32], index: 1, kind: input, shape index: {}]
  %s2 = inlined_call_operand.vmem [shape: f32[1,32], index: 2, kind: input, shape index: {}]
  %s3 = inlined_call_operand.vmem [shape: f32[1,32], index: 3, kind: input, shape index: {}]
  %s4 = inlined_call_operand.vmem [shape: f32[32,32], index: 4, kind: output, shape index: {}]
  %s5 = sld [smem:[#allocation0]]
  $region26: #{_lambda_.7} parent=0
    _
  %s7 = ssub.s32 1, %s5
  %s8 = scalar_select 0, %s7, %s5
  // Predicated region
  $region2: #{_lambda_.7} parent=0 // pred_check
    _
  $region3: #{_lambda_.7} parent=0 // pred_check_branch
    %10 = sbr.rel (0) target = $region5
  $region4: #{_lambda_.7} parent=0 // pred_region
    _
  $region5: #{_lambda_.7} parent=0 // pred_fallthru
    _
  // Predicated region
  $region6: #{_lambda_.7} parent=0 // pred_check
    _
  $region7: #{_lambda_.7} parent=0 // pred_check_branch
    %12 = sbr.rel (0) target = $region9
  $region8: #{_lambda_.7} parent=0 // pred_region
    _
  $region9: #{_lambda_.7} parent=0 // pred_fallthru
    _
  // Predicated region
  $region10: #{_lambda_.7} parent=0 // pred_check
    _
  $region11: #{_lambda_.7} parent=0 // pred_check_branch
    %14 = sbr.rel (0) target = $region13
  $region12: #{_lambda_.7} parent=0 // pred_region
    _
  $region13: #{_lambda_.7} parent=0 // pred_fallthru
    _
  // Predicated region
  $region14: #{_lambda_.7} parent=0 // pred_check
    _
  $region15: #{_lambda_.7} parent=0 // pred_check_branch
    %16 = sbr.rel (0) target = $region17
  $region16: #{_lambda_.7} parent=0 // pred_region
    _
  $region17: #{_lambda_.7} parent=0 // pred_fallthru
    _
  %v18 = vld [vmem:[%s0] sm:$0xff]
  %v19 = vld [vmem:[%s0 + $0x8] sm:$0xff]
  %v20 = vld [vmem:[%s0 + $0x10] sm:$0xff]
  %v21 = vld [vmem:[%s0 + $0x18] sm:$0xff]
  %v22 = vld [vmem:[%s1] sm:$0xf]
  %v23 = vld [vmem:[%s1 + $0x4] sm:$0xf]
  %v24 = vld [vmem:[%s1 + $0x8] sm:$0xf]
  %v25 = vld [vmem:[%s1 + $0xc] sm:$0xf]
  %v26 = vld [vmem:[%s1 + $0x10] sm:$0xf]
  %v27 = vld [vmem:[%s1 + $0x14] sm:$0xf]
  %v28 = vld [vmem:[%s1 + $0x18] sm:$0xf]
  %v29 = vld [vmem:[%s1 + $0x1c] sm:$0xf]
  %v30 = vld [vmem:[%s1 + $0x20] sm:$0xf]
  %v31 = vld [vmem:[%s1 + $0x24] sm:$0xf]
  %v32 = vld [vmem:[%s1 + $0x28] sm:$0xf]
  %v33 = vld [vmem:[%s1 + $0x2c] sm:$0xf]
  %v34 = vld [vmem:[%s1 + $0x30] sm:$0xf]
  %v35 = vld [vmem:[%s1 + $0x34] sm:$0xf]
  %v36 = vld [vmem:[%s1 + $0x38] sm:$0xf]
  %v37 = vld [vmem:[%s1 + $0x3c] sm:$0xf]
  %v38 = vld [vmem:[%s1 + $0x40] sm:$0xf]
  %v39 = vld [vmem:[%s1 + $0x44] sm:$0xf]
  %v40 = vld [vmem:[%s1 + $0x48] sm:$0xf]
  %v41 = vld [vmem:[%s1 + $0x4c] sm:$0xf]
  %v42 = vld [vmem:[%s1 + $0x50] sm:$0xf]
  %v43 = vld [vmem:[%s1 + $0x54] sm:$0xf]
  %v44 = vld [vmem:[%s1 + $0x58] sm:$0xf]
  %v45 = vld [vmem:[%s1 + $0x5c] sm:$0xf]
  %v46 = vld [vmem:[%s1 + $0x60] sm:$0xf]
  %v47 = vld [vmem:[%s1 + $0x64] sm:$0xf]
  %v48 = vld [vmem:[%s1 + $0x68] sm:$0xf]
  %v49 = vld [vmem:[%s1 + $0x6c] sm:$0xf]
  %v50 = vld [vmem:[%s1 + $0x70] sm:$0xf]
  %v51 = vld [vmem:[%s1 + $0x74] sm:$0xf]
  %v52 = vld [vmem:[%s1 + $0x78] sm:$0xf]
  %v53 = vld [vmem:[%s1 + $0x7c] sm:$0xf]
  %v58 = vunpack.c.l.b16 %v18
  %v59 = vunpack.c.h.b16 %v18
  %v60 = vunpack.c.l.b16 %v19
  %v61 = vunpack.c.h.b16 %v19
  %v62 = vunpack.c.l.b16 %v20
  %v63 = vunpack.c.h.b16 %v20
  %v64 = vunpack.c.l.b16 %v21
  %v65 = vunpack.c.h.b16 %v21
  %v66 = vpack.c.b16 %v60, %v58
  %v67 = vpack.c.b16 %v61, %v59
  %v68 = vpack.c.b16 %v64, %v62
  %v69 = vpack.c.b16 %v65, %v63
  %v106 = vunpack.c.l.b16 %v22
  %v107 = vunpack.c.l.b16 %v23
  %v108 = vunpack.c.l.b16 %v24
  %v109 = vunpack.c.l.b16 %v25
  %v110 = vunpack.c.l.b16 %v26
  %v111 = vunpack.c.l.b16 %v27
  %v112 = vunpack.c.l.b16 %v28
  %v113 = vunpack.c.l.b16 %v29
  %v114 = vunpack.c.l.b16 %v30
  %v115 = vunpack.c.l.b16 %v31
  %v116 = vunpack.c.l.b16 %v32
  %v117 = vunpack.c.l.b16 %v33
  %v118 = vunpack.c.l.b16 %v34
  %v119 = vunpack.c.l.b16 %v35
  %v120 = vunpack.c.l.b16 %v36
  %v121 = vunpack.c.l.b16 %v37
  %v122 = vunpack.c.l.b16 %v38
  %v123 = vunpack.c.l.b16 %v39
  %v124 = vunpack.c.l.b16 %v40
  %v125 = vunpack.c.l.b16 %v41
  %v126 = vunpack.c.l.b16 %v42
  %v127 = vunpack.c.l.b16 %v43
  %v128 = vunpack.c.l.b16 %v44
  %v129 = vunpack.c.l.b16 %v45
  %v130 = vunpack.c.l.b16 %v46
  %v131 = vunpack.c.l.b16 %v47
  %v132 = vunpack.c.l.b16 %v48
  %v133 = vunpack.c.l.b16 %v49
  %v134 = vunpack.c.l.b16 %v50
  %v135 = vunpack.c.l.b16 %v51
  %v136 = vunpack.c.l.b16 %v52
  %v137 = vunpack.c.l.b16 %v53
  %v138 = vpack.c.b16 %v107, %v106
  %v139 = vpack.c.b16 %v109, %v108
  %v140 = vpack.c.b16 %v111, %v110
  %v141 = vpack.c.b16 %v113, %v112
  %v142 = vpack.c.b16 %v115, %v114
  %v143 = vpack.c.b16 %v117, %v116
  %v144 = vpack.c.b16 %v119, %v118
  %v145 = vpack.c.b16 %v121, %v120
  %v146 = vpack.c.b16 %v123, %v122
  %v147 = vpack.c.b16 %v125, %v124
  %v148 = vpack.c.b16 %v127, %v126
  %v149 = vpack.c.b16 %v129, %v128
  %v150 = vpack.c.b16 %v131, %v130
  %v151 = vpack.c.b16 %v133, %v132
  %v152 = vpack.c.b16 %v135, %v134
  %v153 = vpack.c.b16 %v137, %v136
  %170 = vmatprep.subr.bf16.mxu0 0
  %171 = vmatpush1.bf16.msra.mxu0 %v138
  %172 = vmatprep.subr.bf16.mxu0 0
  %173 = vmatpush1.bf16.msra.mxu0 %v139
  %174 = vmatprep.subr.bf16.mxu0 0
  %175 = vmatpush1.bf16.msra.mxu0 %v140
  %176 = vmatprep.subr.bf16.mxu0 0
  %177 = vmatpush1.bf16.msra.mxu0 %v141
  %178 = vmatprep.subr.bf16.mxu0 0
  %179 = vmatpush1.bf16.msra.mxu0 %v142
  %180 = vmatprep.subr.bf16.mxu0 0
  %181 = vmatpush1.bf16.msra.mxu0 %v143
  %182 = vmatprep.subr.bf16.mxu0 0
  %183 = vmatpush1.bf16.msra.mxu0 %v144
  %184 = vmatprep.subr.bf16.mxu0 0
  %185 = vmatpush1.bf16.msra.mxu0 %v145
  %186 = vmatprep.subr.bf16.mxu0 0
  %187 = vmatpush1.bf16.msra.mxu0 %v146
  %188 = vmatprep.subr.bf16.mxu0 0
  %189 = vmatpush1.bf16.msra.mxu0 %v147
  %190 = vmatprep.subr.bf16.mxu0 0
  %191 = vmatpush1.bf16.msra.mxu0 %v148
  %192 = vmatprep.subr.bf16.mxu0 0
  %193 = vmatpush1.bf16.msra.mxu0 %v149
  %194 = vmatprep.subr.bf16.mxu0 0
  %195 = vmatpush1.bf16.msra.mxu0 %v150
  %196 = vmatprep.subr.bf16.mxu0 0
  %197 = vmatpush1.bf16.msra.mxu0 %v151
  %198 = vmatprep.subr.bf16.mxu0 0
  %199 = vmatpush1.bf16.msra.mxu0 %v152
  %200 = vmatprep.subr.bf16.mxu0 0
  %201 = vmatpush1.bf16.msra.mxu0 %v153
  %202 = vmatprep.mubr.bf16.mxu0 %v67
  %203 = vmatmul.mubr.bf16.gmra.mrb[0].mxu0 %v66
  %v204 = vpop.f32.mrb[0].mxu0
  %v205 = vadd.f32 0.0, %v204
  %v206 = vpop.f32.mrb[0].mxu0
  %v207 = vpop.f32.mrb[0].mxu0
  %v208 = vadd.f32 0.0, %v207
  %v209 = vpop.f32.mrb[0].mxu0
  %210 = vmatprep.mubr.bf16.mxu0 %v69
  %211 = vmatmul.mubr.bf16.gmra.mrb[0].mxu0 %v68
  %v212 = vpop.f32.mrb[0].mxu0
  %v213 = vadd.f32 0.0, %v212
  %v214 = vpop.f32.mrb[0].mxu0
  %v215 = vpop.f32.mrb[0].mxu0
  %v216 = vadd.f32 0.0, %v215
  %v217 = vpop.f32.mrb[0].mxu0
  %218 = vdwg.mxu0
  %vm219 = vcmask 261120
  %v220 = vsel %vm219, %v205, 0.0
  %v221 = vsel %vm219, %v208, 0.0
  %v222 = vadd.f32 %v220, %v221
  %v223 = vsel %vm219, %v213, 0.0
  %v224 = vadd.f32 %v222, %v223
  %v225 = vsel %vm219, %v216, 0.0
  %v226 = vadd.f32 %v224, %v225
  %v227 = vrot.slane %v226, 4
  %v228 = vadd.f32 %v226, %v227
  %v229 = vrot.slane %v228, 2
  %v230 = vadd.f32 %v228, %v229
  %v231 = vrot.slane %v230, 1
  %v232 = vadd.f32 %v230, %v231
  %v233 = vrcp.pop 32.0
  %v234 = vmul.f32 %v232, %v233
  %v235 = vsub.f32 %v205, %v234
  %v236 = vsub.f32 %v208, %v234
  %v237 = vsub.f32 %v213, %v234
  %v238 = vsub.f32 %v216, %v234
  %v239 = vmul.f32 %v235, %v235
  %v240 = vmul.f32 %v236, %v236
  %v241 = vmul.f32 %v237, %v237
  %v242 = vmul.f32 %v238, %v238
  %v243 = vsel %vm219, %v239, 0.0
  %v244 = vsel %vm219, %v240, 0.0
  %v245 = vadd.f32 %v243, %v244
  %v246 = vsel %vm219, %v241, 0.0
  %v247 = vadd.f32 %v245, %v246
  %v248 = vsel %vm219, %v242, 0.0
  %v249 = vadd.f32 %v247, %v248
  %v250 = vrot.slane %v249, 4
  %v251 = vadd.f32 %v249, %v250
  %v252 = vrot.slane %v251, 2
  %v253 = vadd.f32 %v251, %v252
  %v254 = vrot.slane %v253, 1
  %v255 = vadd.f32 %v253, %v254
  %v256 = vmul.f32 %v255, %v233
  %v257 = vld [vmem:[%s2] sm:$0x1]
  %v258 = vadd.f32 %v256, 1e-05
  %v259 = vrsqrt.pop %v258
  %v260 = vmul.f32 %v257, %v259
  %v262 = vlaneseq
  %v263 = vshrl.u32 %v262, 7
  %v264 = vsub.s32 0, %v263
  %v265 = vrot.slane %v260, %v264
  %v267 = vmul.f32 %v235, %v265
  %v268 = vmul.f32 %v236, %v265
  %v269 = vmul.f32 %v237, %v265
  %v270 = vmul.f32 %v238, %v265
  %v271 = vld [vmem:[%s3] sm:$0x1]
  %v273 = vlaneseq
  %v274 = vshrl.u32 %v273, 7
  %v275 = vsub.s32 0, %v274
  %v276 = vrot.slane %v271, %v275
  %v278 = vadd.f32 %v267, %v276
  %v279 = vadd.f32 %v268, %v276
  %v280 = vadd.f32 %v269, %v276
  %v281 = vadd.f32 %v270, %v276
  %vm282 = vcmp.ge.f32.partialorder %v278, 0.0
  %vm283 = vcmp.ge.f32.partialorder %v279, 0.0
  %vm284 = vcmp.ge.f32.partialorder %v280, 0.0
  %vm285 = vcmp.ge.f32.partialorder %v281, 0.0
  %v286 = vmul.f32 %v278, 0.2
  %v287 = vmul.f32 %v279, 0.2
  %v288 = vmul.f32 %v280, 0.2
  %v289 = vmul.f32 %v281, 0.2
  %v290 = vsel %vm282, %v278, %v286
  %v291 = vsel %vm283, %v279, %v287
  %v292 = vsel %vm284, %v280, %v288
  %v293 = vsel %vm285, %v281, %v289
  %294 = vst.msk [vmem:[%s4] sm:$0xff] %vm219, %v290
  %295 = vst.msk [vmem:[%s4 + $0x8] sm:$0xff] %vm219, %v291
  %296 = vst.msk [vmem:[%s4 + $0x10] sm:$0xff] %vm219, %v292
  %297 = vst.msk [vmem:[%s4 + $0x18] sm:$0xff] %vm219, %v293
  // Predicated region
  $region18: #{_lambda_.7} parent=0 // pred_check
    _
  $region19: #{_lambda_.7} parent=0 // pred_check_branch
    %299 = sbr.rel (0) target = $region21
  $region20: #{_lambda_.7} parent=0 // pred_region
    _
  $region21: #{_lambda_.7} parent=0 // pred_fallthru
    _
  // Predicated region
  $region22: #{_lambda_.7} parent=0 // pred_check
    _
  $region23: #{_lambda_.7} parent=0 // pred_check_branch
    %301 = sbr.rel (0) target = $region25
  $region24: #{_lambda_.7} parent=0 // pred_region
    _
  $region25: #{_lambda_.7} parent=0 // pred_fallthru
    _

// kernel: _lambda_.8
$region0: #{_lambda_.8}
  #allocation0 [shape = 'u32[]', space=smem, size = 0x4, offset = 0x4, fixed_abs, tag = 'smem constant byte address 0x4 - core index']
  #allocation1 [shape = 'u32[144,128]{1,0:T(1,128)}', space=vmem, size = 0x12000, scoped, tag = 'internal scratch']
  %s0 = inlined_call_operand.vmem [shape: bf16[18,512], index: 0, kind: input, shape index: {}]
  %s1 = inlined_call_operand.vmem [shape: bf16[512,64], index: 1, kind: input, shape index: {}]
  %s2 = inlined_call_operand.vmem [shape: f32[1,64], index: 2, kind: input, shape index: {}]
  %s3 = inlined_call_operand.vmem [shape: f32[1,64], index: 3, kind: input, shape index: {}]
  %s4 = inlined_call_operand.vmem [shape: f32[18,64], index: 4, kind: output, shape index: {}]
  %s5 = sld [smem:[#allocation0]]
  $region26: #{_lambda_.8} parent=0
    _
  %s7 = ssub.s32 1, %s5
  %s8 = scalar_select 0, %s7, %s5
  // Predicated region
  $region2: #{_lambda_.8} parent=0 // pred_check
    _
  $region3: #{_lambda_.8} parent=0 // pred_check_branch
    %10 = sbr.rel (0) target = $region5
  $region4: #{_lambda_.8} parent=0 // pred_region
    _
  $region5: #{_lambda_.8} parent=0 // pred_fallthru
    _
  // Predicated region
  $region6: #{_lambda_.8} parent=0 // pred_check
    _
  $region7: #{_lambda_.8} parent=0 // pred_check_branch
    %12 = sbr.rel (0) target = $region9
  $region8: #{_lambda_.8} parent=0 // pred_region
    _
  $region9: #{_lambda_.8} parent=0 // pred_fallthru
    _
  // Predicated region
  $region10: #{_lambda_.8} parent=0 // pred_check
    _
  $region11: #{_lambda_.8} parent=0 // pred_check_branch
    %14 = sbr.rel (0) target = $region13
  $region12: #{_lambda_.8} parent=0 // pred_region
    _
  $region13: #{_lambda_.8} parent=0 // pred_fallthru
    _
  // Predicated region
  $region14: #{_lambda_.8} parent=0 // pred_check
    _
  $region15: #{_lambda_.8} parent=0 // pred_check_branch
    %16 = sbr.rel (0) target = $region17
  $region16: #{_lambda_.8} parent=0 // pred_region
    _
  $region17: #{_lambda_.8} parent=0 // pred_fallthru
    _
  %v18 = vld [vmem:[%s0] sm:$0xff]
  %v19 = vld [vmem:[%s0 + $0x8] sm:$0xff]
  %v20 = vld [vmem:[%s0 + $0x10] sm:$0xff]
  %v21 = vld [vmem:[%s0 + $0x18] sm:$0xff]
  %v22 = vld [vmem:[%s0 + $0x20] sm:$0x11]
  %v23 = vld [vmem:[%s0 + $0x28] sm:$0x11]
  %v24 = vld [vmem:[%s1] sm:$0xf]
  %v25 = vld [vmem:[%s1 + $0x4] sm:$0xf]
  %v26 = vld [vmem:[%s1 + $0x8] sm:$0xf]
  %v27 = vld [vmem:[%s1 + $0xc] sm:$0xf]
  %v28 = vld [vmem:[%s1 + $0x10] sm:$0xf]
  %v29 = vld [vmem:[%s1 + $0x14] sm:$0xf]
  %v30 = vld [vmem:[%s1 + $0x18] sm:$0xf]
  %v31 = vld [vmem:[%s1 + $0x1c] sm:$0xf]
  %v32 = vld [vmem:[%s1 + $0x20] sm:$0xf]
  %v33 = vld [vmem:[%s1 + $0x24] sm:$0xf]
  %v34 = vld [vmem:[%s1 + $0x28] sm:$0xf]
  %v35 = vld [vmem:[%s1 + $0x2c] sm:$0xf]
  %v36 = vld [vmem:[%s1 + $0x30] sm:$0xf]
  %v37 = vld [vmem:[%s1 + $0x34] sm:$0xf]
  %v38 = vld [vmem:[%s1 + $0x38] sm:$0xf]
  %v39 = vld [vmem:[%s1 + $0x3c] sm:$0xf]
  %v40 = vld [vmem:[%s1 + $0x40] sm:$0xf]
  %v41 = vld [vmem:[%s1 + $0x44] sm:$0xf]
  %v42 = vld [vmem:[%s1 + $0x48] sm:$0xf]
  %v43 = vld [vmem:[%s1 + $0x4c] sm:$0xf]
  %v44 = vld [vmem:[%s1 + $0x50] sm:$0xf]
  %v45 = vld [vmem:[%s1 + $0x54] sm:$0xf]
  %v46 = vld [vmem:[%s1 + $0x58] sm:$0xf]
  %v47 = vld [vmem:[%s1 + $0x5c] sm:$0xf]
  %v48 = vld [vmem:[%s1 + $0x60] sm:$0xf]
  %v49 = vld [vmem:[%s1 + $0x64] sm:$0xf]
  %v50 = vld [vmem:[%s1 + $0x68] sm:$0xf]
  %v51 = vld [vmem:[%s1 + $0x6c] sm:$0xf]
  %v52 = vld [vmem:[%s1 + $0x70] sm:$0xf]
  %v53 = vld [vmem:[%s1 + $0x74] sm:$0xf]
  %v54 = vld [vmem:[%s1 + $0x78] sm:$0xf]
  %v55 = vld [vmem:[%s1 + $0x7c] sm:$0xf]
  %v56 = vld [vmem:[%s1 + $0x80] sm:$0xf]
  %v57 = vld [vmem:[%s1 + $0x84] sm:$0xf]
  %v58 = vld [vmem:[%s1 + $0x88] sm:$0xf]
  %v59 = vld [vmem:[%s1 + $0x8c] sm:$0xf]
  %v60 = vld [vmem:[%s1 + $0x90] sm:$0xf]
  %v61 = vld [vmem:[%s1 + $0x94] sm:$0xf]
  %v62 = vld [vmem:[%s1 + $0x98] sm:$0xf]
  %v63 = vld [vmem:[%s1 + $0x9c] sm:$0xf]
  %v64 = vld [vmem:[%s1 + $0xa0] sm:$0xf]
  %v65 = vld [vmem:[%s1 + $0xa4] sm:$0xf]
  %v66 = vld [vmem:[%s1 + $0xa8] sm:$0xf]
  %v67 = vld [vmem:[%s1 + $0xac] sm:$0xf]
  %v68 = vld [vmem:[%s1 + $0xb0] sm:$0xf]
  %v69 = vld [vmem:[%s1 + $0xb4] sm:$0xf]
  %v70 = vld [vmem:[%s1 + $0xb8] sm:$0xf]
  %v71 = vld [vmem:[%s1 + $0xbc] sm:$0xf]
  %v72 = vld [vmem:[%s1 + $0xc0] sm:$0xf]
  %v73 = vld [vmem:[%s1 + $0xc4] sm:$0xf]
  %v74 = vld [vmem:[%s1 + $0xc8] sm:$0xf]
  %v75 = vld [vmem:[%s1 + $0xcc] sm:$0xf]
  %v76 = vld [vmem:[%s1 + $0xd0] sm:$0xf]
  %v77 = vld [vmem:[%s1 + $0xd4] sm:$0xf]
  %v78 = vld [vmem:[%s1 + $0xd8] sm:$0xf]
  %v79 = vld [vmem:[%s1 + $0xdc] sm:$0xf]
  %v80 = vld [vmem:[%s1 + $0xe0] sm:$0xf]
  %v81 = vld [vmem:[%s1 + $0xe4] sm:$0xf]
  %v82 = vld [vmem:[%s1 + $0xe8] sm:$0xf]
  %v83 = vld [vmem:[%s1 + $0xec] sm:$0xf]
  %v84 = vld [vmem:[%s1 + $0xf0] sm:$0xf]
  %v85 = vld [vmem:[%s1 + $0xf4] sm:$0xf]
  %v86 = vld [vmem:[%s1 + $0xf8] sm:$0xf]
  %v87 = vld [vmem:[%s1 + $0xfc] sm:$0xf]
  %v94 = vunpack.c.l.b16 %v18
  %v95 = vunpack.c.h.b16 %v18
  %v96 = vunpack.c.l.b16 %v19
  %v97 = vunpack.c.h.b16 %v19
  %v98 = vunpack.c.l.b16 %v20
  %v99 = vunpack.c.h.b16 %v20
  %v100 = vunpack.c.l.b16 %v21
  %v101 = vunpack.c.h.b16 %v21
  %v102 = vunpack.c.l.b16 %v22
  %v103 = vunpack.c.h.b16 %v22
  %v104 = vunpack.c.l.b16 %v23
  %v105 = vunpack.c.h.b16 %v23
  %v106 = vpack.c.b16 %v98, %v94
  %v107 = vpack.c.b16 %v99, %v95
  %v108 = vpack.c.b16 %v100, %v96
  %v109 = vpack.c.b16 %v101, %v97
  %v110 = vpack.c.b16 %v102, %v102
  %v111 = vpack.c.b16 %v103, %v103
  %v112 = vpack.c.b16 %v104, %v104
  %v113 = vpack.c.b16 %v105, %v105
  %v186 = vunpack.c.l.b16 %v24
  %v187 = vunpack.c.l.b16 %v25
  %v188 = vunpack.c.l.b16 %v26
  %v189 = vunpack.c.l.b16 %v27
  %v190 = vunpack.c.l.b16 %v28
  %v191 = vunpack.c.l.b16 %v29
  %v192 = vunpack.c.l.b16 %v30
  %v193 = vunpack.c.l.b16 %v31
  %v194 = vunpack.c.l.b16 %v32
  %v195 = vunpack.c.l.b16 %v33
  %v196 = vunpack.c.l.b16 %v34
  %v197 = vunpack.c.l.b16 %v35
  %v198 = vunpack.c.l.b16 %v36
  %v199 = vunpack.c.l.b16 %v37
  %v200 = vunpack.c.l.b16 %v38
  %v201 = vunpack.c.l.b16 %v39
  %v202 = vunpack.c.l.b16 %v40
  %v203 = vunpack.c.l.b16 %v41
  %v204 = vunpack.c.l.b16 %v42
  %v205 = vunpack.c.l.b16 %v43
  %v206 = vunpack.c.l.b16 %v44
  %v207 = vunpack.c.l.b16 %v45
  %v208 = vunpack.c.l.b16 %v46
  %v209 = vunpack.c.l.b16 %v47
  %v210 = vunpack.c.l.b16 %v48
  %v211 = vunpack.c.l.b16 %v49
  %v212 = vunpack.c.l.b16 %v50
  %v213 = vunpack.c.l.b16 %v51
  %v214 = vunpack.c.l.b16 %v52
  %v215 = vunpack.c.l.b16 %v53
  %v216 = vunpack.c.l.b16 %v54
  %v217 = vunpack.c.l.b16 %v55
  %v218 = vunpack.c.l.b16 %v56
  %v219 = vunpack.c.l.b16 %v57
  %v220 = vunpack.c.l.b16 %v58
  %v221 = vunpack.c.l.b16 %v59
  %v222 = vunpack.c.l.b16 %v60
  %v223 = vunpack.c.l.b16 %v61
  %v224 = vunpack.c.l.b16 %v62
  %v225 = vunpack.c.l.b16 %v63
  %v226 = vunpack.c.l.b16 %v64
  %v227 = vunpack.c.l.b16 %v65
  %v228 = vunpack.c.l.b16 %v66
  %v229 = vunpack.c.l.b16 %v67
  %v230 = vunpack.c.l.b16 %v68
  %v231 = vunpack.c.l.b16 %v69
  %v232 = vunpack.c.l.b16 %v70
  %v233 = vunpack.c.l.b16 %v71
  %v234 = vunpack.c.l.b16 %v72
  %v235 = vunpack.c.l.b16 %v73
  %v236 = vunpack.c.l.b16 %v74
  %v237 = vunpack.c.l.b16 %v75
  %v238 = vunpack.c.l.b16 %v76
  %v239 = vunpack.c.l.b16 %v77
  %v240 = vunpack.c.l.b16 %v78
  %v241 = vunpack.c.l.b16 %v79
  %v242 = vunpack.c.l.b16 %v80
  %v243 = vunpack.c.l.b16 %v81
  %v244 = vunpack.c.l.b16 %v82
  %v245 = vunpack.c.l.b16 %v83
  %v246 = vunpack.c.l.b16 %v84
  %v247 = vunpack.c.l.b16 %v85
  %v248 = vunpack.c.l.b16 %v86
  %v249 = vunpack.c.l.b16 %v87
  %v250 = vpack.c.b16 %v187, %v186
  %v251 = vpack.c.b16 %v189, %v188
  %v252 = vpack.c.b16 %v191, %v190
  %v253 = vpack.c.b16 %v193, %v192
  %v254 = vpack.c.b16 %v195, %v194
  %v255 = vpack.c.b16 %v197, %v196
  %v256 = vpack.c.b16 %v199, %v198
  %v257 = vpack.c.b16 %v201, %v200
  %v258 = vpack.c.b16 %v203, %v202
  %v259 = vpack.c.b16 %v205, %v204
  %v260 = vpack.c.b16 %v207, %v206
  %v261 = vpack.c.b16 %v209, %v208
  %v262 = vpack.c.b16 %v211, %v210
  %v263 = vpack.c.b16 %v213, %v212
  %v264 = vpack.c.b16 %v215, %v214
  %v265 = vpack.c.b16 %v217, %v216
  %v266 = vpack.c.b16 %v219, %v218
  %v267 = vpack.c.b16 %v221, %v220
  %v268 = vpack.c.b16 %v223, %v222
  %v269 = vpack.c.b16 %v225, %v224
  %v270 = vpack.c.b16 %v227, %v226
  %v271 = vpack.c.b16 %v229, %v228
  %v272 = vpack.c.b16 %v231, %v230
  %v273 = vpack.c.b16 %v233, %v232
  %v274 = vpack.c.b16 %v235, %v234
  %v275 = vpack.c.b16 %v237, %v236
  %v276 = vpack.c.b16 %v239, %v238
  %v277 = vpack.c.b16 %v241, %v240
  %v278 = vpack.c.b16 %v243, %v242
  %v279 = vpack.c.b16 %v245, %v244
  %v280 = vpack.c.b16 %v247, %v246
  %v281 = vpack.c.b16 %v249, %v248
  %314 = vmatprep.subr.bf16.mxu0 0
  %315 = vmatpush1.bf16.msra.mxu0 %v250
  %316 = vmatprep.subr.bf16.mxu0 0
  %317 = vmatpush1.bf16.msra.mxu0 %v251
  %318 = vmatprep.subr.bf16.mxu0 0
  %319 = vmatpush1.bf16.msra.mxu0 %v252
  %320 = vmatprep.subr.bf16.mxu0 0
  %321 = vmatpush1.bf16.msra.mxu0 %v253
  %322 = vmatprep.subr.bf16.mxu0 0
  %323 = vmatpush1.bf16.msra.mxu0 %v254
  %324 = vmatprep.subr.bf16.mxu0 0
  %325 = vmatpush1.bf16.msra.mxu0 %v255
  %326 = vmatprep.subr.bf16.mxu0 0
  %327 = vmatpush1.bf16.msra.mxu0 %v256
  %328 = vmatprep.subr.bf16.mxu0 0
  %329 = vmatpush1.bf16.msra.mxu0 %v257
  %330 = vmatprep.subr.bf16.mxu0 0
  %331 = vmatpush1.bf16.msra.mxu0 %v258
  %332 = vmatprep.subr.bf16.mxu0 0
  %333 = vmatpush1.bf16.msra.mxu0 %v259
  %334 = vmatprep.subr.bf16.mxu0 0
  %335 = vmatpush1.bf16.msra.mxu0 %v260
  %336 = vmatprep.subr.bf16.mxu0 0
  %337 = vmatpush1.bf16.msra.mxu0 %v261
  %338 = vmatprep.subr.bf16.mxu0 0
  %339 = vmatpush1.bf16.msra.mxu0 %v262
  %340 = vmatprep.subr.bf16.mxu0 0
  %341 = vmatpush1.bf16.msra.mxu0 %v263
  %342 = vmatprep.subr.bf16.mxu0 0
  %343 = vmatpush1.bf16.msra.mxu0 %v264
  %344 = vmatprep.subr.bf16.mxu0 0
  %345 = vmatpush1.bf16.msra.mxu0 %v265
  %346 = vmatprep.mubr.bf16.mxu0 %v107
  %347 = vmatmul.mubr.bf16.gmra.mrb[0].mxu0 %v106
  %v348 = vpop.f32.mrb[0].mxu0
  %v349 = vadd.f32 0.0, %v348
  %v350 = vpop.f32.mrb[0].mxu0
  %v351 = vpop.f32.mrb[0].mxu0
  %v352 = vadd.f32 0.0, %v351
  %v353 = vpop.f32.mrb[0].mxu0
  %354 = vmatprep.mubr.bf16.mxu0 %v111
  %355 = vmatmul.mubr.bf16.gmra.mrb[0].mxu0 %v110
  %v356 = vpop.f32.mrb[0].mxu0
  %v357 = vadd.f32 0.0, %v356
  %v358 = vpop.f32.mrb[0].mxu0
  %v359 = vpop.f32.mrb[0].mxu0
  %v360 = vpop.f32.mrb[0].mxu0
  %361 = vdwg.mxu0
  %362 = vmatprep.subr.bf16.mxu0 0
  %363 = vmatpush1.bf16.msra.mxu0 %v266
  %364 = vmatprep.subr.bf16.mxu0 0
  %365 = vmatpush1.bf16.msra.mxu0 %v267
  %366 = vmatprep.subr.bf16.mxu0 0
  %367 = vmatpush1.bf16.msra.mxu0 %v268
  %368 = vmatprep.subr.bf16.mxu0 0
  %369 = vmatpush1.bf16.msra.mxu0 %v269
  %370 = vmatprep.subr.bf16.mxu0 0
  %371 = vmatpush1.bf16.msra.mxu0 %v270
  %372 = vmatprep.subr.bf16.mxu0 0
  %373 = vmatpush1.bf16.msra.mxu0 %v271
  %374 = vmatprep.subr.bf16.mxu0 0
  %375 = vmatpush1.bf16.msra.mxu0 %v272
  %376 = vmatprep.subr.bf16.mxu0 0
  %377 = vmatpush1.bf16.msra.mxu0 %v273
  %378 = vmatprep.subr.bf16.mxu0 0
  %379 = vmatpush1.bf16.msra.mxu0 %v274
  %380 = vmatprep.subr.bf16.mxu0 0
  %381 = vmatpush1.bf16.msra.mxu0 %v275
  %382 = vmatprep.subr.bf16.mxu0 0
  %383 = vmatpush1.bf16.msra.mxu0 %v276
  %384 = vmatprep.subr.bf16.mxu0 0
  %385 = vmatpush1.bf16.msra.mxu0 %v277
  %386 = vmatprep.subr.bf16.mxu0 0
  %387 = vmatpush1.bf16.msra.mxu0 %v278
  %388 = vmatprep.subr.bf16.mxu0 0
  %389 = vmatpush1.bf16.msra.mxu0 %v279
  %390 = vmatprep.subr.bf16.mxu0 0
  %391 = vmatpush1.bf16.msra.mxu0 %v280
  %392 = vmatprep.subr.bf16.mxu0 0
  %393 = vmatpush1.bf16.msra.mxu0 %v281
  %394 = vmatprep.mubr.bf16.mxu0 %v109
  %395 = vmatmul.mubr.bf16.gmra.mrb[0].mxu0 %v108
  %v396 = vpop.f32.mrb[0].mxu0
  %v397 = vadd.f32 %v349, %v396
  %v398 = vpop.f32.mrb[0].mxu0
  %v399 = vpop.f32.mrb[0].mxu0
  %v400 = vadd.f32 %v352, %v399
  %v401 = vpop.f32.mrb[0].mxu0
  %402 = vmatprep.mubr.bf16.mxu0 %v113
  %403 = vmatmul.mubr.bf16.gmra.mrb[0].mxu0 %v112
  %v404 = vpop.f32.mrb[0].mxu0
  %v405 = vadd.f32 %v357, %v404
  %v406 = vpop.f32.mrb[0].mxu0
  %v407 = vpop.f32.mrb[0].mxu0
  %v408 = vpop.f32.mrb[0].mxu0
  %409 = vdwg.mxu0
  %vm410 = vcmask 523264
  %v411 = vsel %vm410, %v397, 0.0
  %v412 = vsel %vm410, %v400, 0.0
  %v413 = vadd.f32 %v411, %v412
  %vm414 = vcmask 517120
  %v415 = vsel %vm414, %v405, 0.0
  %v416 = vadd.f32 %v413, %v415
  %v417 = vrot.slane %v416, 4
  %v418 = vadd.f32 %v416, %v417
  %v419 = vrot.slane %v418, 2
  %v420 = vadd.f32 %v418, %v419
  %v421 = vrot.slane %v420, 1
  %v422 = vadd.f32 %v420, %v421
  %v423 = vrcp.pop 18.0
  %v424 = vmul.f32 %v422, %v423
  %v425 = vsub.f32 %v397, %v424
  %v426 = vsub.f32 %v400, %v424
  %v427 = vsub.f32 %v405, %v424
  %v428 = vmul.f32 %v425, %v425
  %v429 = vmul.f32 %v426, %v426
  %v430 = vmul.f32 %v427, %v427
  %v431 = vsel %vm410, %v428, 0.0
  %v432 = vsel %vm410, %v429, 0.0
  %v433 = vadd.f32 %v431, %v432
  %v434 = vsel %vm414, %v430, 0.0
  %v435 = vadd.f32 %v433, %v434
  %v436 = vrot.slane %v435, 4
  %v437 = vadd.f32 %v435, %v436
  %v438 = vrot.slane %v437, 2
  %v439 = vadd.f32 %v437, %v438
  %v440 = vrot.slane %v439, 1
  %v441 = vadd.f32 %v439, %v440
  %v442 = vmul.f32 %v441, %v423
  %v443 = vld [vmem:[%s2] sm:$0x1]
  %v444 = vadd.f32 %v442, 1e-05
  %v445 = vrsqrt.pop %v444
  %v446 = vmul.f32 %v443, %v445
  %v448 = vlaneseq
  %v449 = vshrl.u32 %v448, 7
  %v450 = vsub.s32 0, %v449
  %v451 = vrot.slane %v446, %v450
  %v453 = vmul.f32 %v425, %v451
  %v454 = vmul.f32 %v426, %v451
  %v455 = vmul.f32 %v427, %v451
  %v456 = vld [vmem:[%s3] sm:$0x1]
  %v458 = vlaneseq
  %v459 = vshrl.u32 %v458, 7
  %v460 = vsub.s32 0, %v459
  %v461 = vrot.slane %v456, %v460
  %v463 = vadd.f32 %v453, %v461
  %v464 = vadd.f32 %v454, %v461
  %v465 = vadd.f32 %v455, %v461
  %vm466 = vcmp.ge.f32.partialorder %v463, 0.0
  %vm467 = vcmp.ge.f32.partialorder %v464, 0.0
  %vm468 = vcmp.ge.f32.partialorder %v465, 0.0
  %v469 = vmul.f32 %v463, 0.2
  %v470 = vmul.f32 %v464, 0.2
  %v471 = vmul.f32 %v465, 0.2
  %v472 = vsel %vm466, %v463, %v469
  %v473 = vsel %vm467, %v464, %v470
  %v474 = vsel %vm468, %v465, %v471
  %475 = vst.msk [vmem:[%s4] sm:$0xff] %vm410, %v472
  %476 = vst.msk [vmem:[%s4 + $0x8] sm:$0xff] %vm410, %v473
  %477 = vst.msk [vmem:[%s4 + $0x10] sm:$0x3] %vm414, %v474
  // Predicated region
  $region18: #{_lambda_.8} parent=0 // pred_check
    _
  $region19: #{_lambda_.8} parent=0 // pred_check_branch
    %479 = sbr.rel (0) target = $region21
  $region20: #{_lambda_.8} parent=0 // pred_region
    _
  $region21: #{_lambda_.8} parent=0 // pred_fallthru
    _
  // Predicated region
  $region22: #{_lambda_.8} parent=0 // pred_check
    _
  $region23: #{_lambda_.8} parent=0 // pred_check_branch
    %481 = sbr.rel (0) target = $region25
  $region24: #{_lambda_.8} parent=0 // pred_region
    _
  $region25: #{_lambda_.8} parent=0 // pred_fallthru
    _

// kernel: _lambda_.9
$region0: #{_lambda_.9}
  #allocation0 [shape = 'u32[]', space=smem, size = 0x4, offset = 0x4, fixed_abs, tag = 'smem constant byte address 0x4 - core index']
  #allocation1 [shape = 'u32[144,128]{1,0:T(1,128)}', space=vmem, size = 0x12000, scoped, tag = 'internal scratch']
  #allocation2 [shape = 'f32[1,1]{1,0:T(1,128)S(1)}', space=vmem, size = 0x200, scoped, tag = 'scoped memory for _lambda_.9']
  %s0 = inlined_call_operand.vmem [shape: bf16[8,1024], index: 0, kind: input, shape index: {}]
  %s1 = inlined_call_operand.vmem [shape: bf16[1024,1], index: 1, kind: input, shape index: {}]
  %s2 = inlined_call_operand.<no memory space> [shape: f32[1,1], index: 2, kind: input, shape index: {}]
  %s3 = inlined_call_operand.vmem [shape: f32[8,1], index: 3, kind: output, shape index: {}]
  %s4 = sld [smem:[#allocation0]]
  $region22: #{_lambda_.9} parent=0
    _
  %s6 = ssub.s32 1, %s4
  %s7 = scalar_select 0, %s6, %s4
  %v8 = vstv %s2
  %9 = vst [vmem:[#allocation2] sm:$0x1] %v8
  // Predicated region
  $region2: #{_lambda_.9} parent=0 // pred_check
    _
  $region3: #{_lambda_.9} parent=0 // pred_check_branch
    %11 = sbr.rel (0) target = $region5
  $region4: #{_lambda_.9} parent=0 // pred_region
    _
  $region5: #{_lambda_.9} parent=0 // pred_fallthru
    _
  // Predicated region
  $region6: #{_lambda_.9} parent=0 // pred_check
    _
  $region7: #{_lambda_.9} parent=0 // pred_check_branch
    %13 = sbr.rel (0) target = $region9
  $region8: #{_lambda_.9} parent=0 // pred_region
    _
  $region9: #{_lambda_.9} parent=0 // pred_fallthru
    _
  // Predicated region
  $region10: #{_lambda_.9} parent=0 // pred_check
    _
  $region11: #{_lambda_.9} parent=0 // pred_check_branch
    %15 = sbr.rel (0) target = $region13
  $region12: #{_lambda_.9} parent=0 // pred_region
    _
  $region13: #{_lambda_.9} parent=0 // pred_fallthru
    _
  %v17 = vld [vmem:[%s0] sm:$0xff]
  %v18 = vld [vmem:[%s0 + $0x8] sm:$0xff]
  %v19 = vld [vmem:[%s0 + $0x10] sm:$0xff]
  %v20 = vld [vmem:[%s0 + $0x18] sm:$0xff]
  %v21 = vld [vmem:[%s1] sm:$0xf]
  %v22 = vld [vmem:[%s1 + $0x4] sm:$0xf]
  %v23 = vld [vmem:[%s1 + $0x8] sm:$0xf]
  %v24 = vld [vmem:[%s1 + $0xc] sm:$0xf]
  %v25 = vld [vmem:[%s1 + $0x10] sm:$0xf]
  %v26 = vld [vmem:[%s1 + $0x14] sm:$0xf]
  %v27 = vld [vmem:[%s1 + $0x18] sm:$0xf]
  %v28 = vld [vmem:[%s1 + $0x1c] sm:$0xf]
  %v29 = vld [vmem:[%s1 + $0x20] sm:$0xf]
  %v30 = vld [vmem:[%s1 + $0x24] sm:$0xf]
  %v31 = vld [vmem:[%s1 + $0x28] sm:$0xf]
  %v32 = vld [vmem:[%s1 + $0x2c] sm:$0xf]
  %v33 = vld [vmem:[%s1 + $0x30] sm:$0xf]
  %v34 = vld [vmem:[%s1 + $0x34] sm:$0xf]
  %v35 = vld [vmem:[%s1 + $0x38] sm:$0xf]
  %v36 = vld [vmem:[%s1 + $0x3c] sm:$0xf]
  %v37 = vld [vmem:[%s1 + $0x40] sm:$0xf]
  %v38 = vld [vmem:[%s1 + $0x44] sm:$0xf]
  %v39 = vld [vmem:[%s1 + $0x48] sm:$0xf]
  %v40 = vld [vmem:[%s1 + $0x4c] sm:$0xf]
  %v41 = vld [vmem:[%s1 + $0x50] sm:$0xf]
  %v42 = vld [vmem:[%s1 + $0x54] sm:$0xf]
  %v43 = vld [vmem:[%s1 + $0x58] sm:$0xf]
  %v44 = vld [vmem:[%s1 + $0x5c] sm:$0xf]
  %v45 = vld [vmem:[%s1 + $0x60] sm:$0xf]
  %v46 = vld [vmem:[%s1 + $0x64] sm:$0xf]
  %v47 = vld [vmem:[%s1 + $0x68] sm:$0xf]
  %v48 = vld [vmem:[%s1 + $0x6c] sm:$0xf]
  %v49 = vld [vmem:[%s1 + $0x70] sm:$0xf]
  %v50 = vld [vmem:[%s1 + $0x74] sm:$0xf]
  %v51 = vld [vmem:[%s1 + $0x78] sm:$0xf]
  %v52 = vld [vmem:[%s1 + $0x7c] sm:$0xf]
  %v53 = vld [vmem:[%s1 + $0x80] sm:$0xf]
  %v54 = vld [vmem:[%s1 + $0x84] sm:$0xf]
  %v55 = vld [vmem:[%s1 + $0x88] sm:$0xf]
  %v56 = vld [vmem:[%s1 + $0x8c] sm:$0xf]
  %v57 = vld [vmem:[%s1 + $0x90] sm:$0xf]
  %v58 = vld [vmem:[%s1 + $0x94] sm:$0xf]
  %v59 = vld [vmem:[%s1 + $0x98] sm:$0xf]
  %v60 = vld [vmem:[%s1 + $0x9c] sm:$0xf]
  %v61 = vld [vmem:[%s1 + $0xa0] sm:$0xf]
  %v62 = vld [vmem:[%s1 + $0xa4] sm:$0xf]
  %v63 = vld [vmem:[%s1 + $0xa8] sm:$0xf]
  %v64 = vld [vmem:[%s1 + $0xac] sm:$0xf]
  %v65 = vld [vmem:[%s1 + $0xb0] sm:$0xf]
  %v66 = vld [vmem:[%s1 + $0xb4] sm:$0xf]
  %v67 = vld [vmem:[%s1 + $0xb8] sm:$0xf]
  %v68 = vld [vmem:[%s1 + $0xbc] sm:$0xf]
  %v69 = vld [vmem:[%s1 + $0xc0] sm:$0xf]
  %v70 = vld [vmem:[%s1 + $0xc4] sm:$0xf]
  %v71 = vld [vmem:[%s1 + $0xc8] sm:$0xf]
  %v72 = vld [vmem:[%s1 + $0xcc] sm:$0xf]
  %v73 = vld [vmem:[%s1 + $0xd0] sm:$0xf]
  %v74 = vld [vmem:[%s1 + $0xd4] sm:$0xf]
  %v75 = vld [vmem:[%s1 + $0xd8] sm:$0xf]
  %v76 = vld [vmem:[%s1 + $0xdc] sm:$0xf]
  %v77 = vld [vmem:[%s1 + $0xe0] sm:$0xf]
  %v78 = vld [vmem:[%s1 + $0xe4] sm:$0xf]
  %v79 = vld [vmem:[%s1 + $0xe8] sm:$0xf]
  %v80 = vld [vmem:[%s1 + $0xec] sm:$0xf]
  %v81 = vld [vmem:[%s1 + $0xf0] sm:$0xf]
  %v82 = vld [vmem:[%s1 + $0xf4] sm:$0xf]
  %v83 = vld [vmem:[%s1 + $0xf8] sm:$0xf]
  %v84 = vld [vmem:[%s1 + $0xfc] sm:$0xf]
  %v85 = vld [vmem:[%s1 + $0x100] sm:$0xf]
  %v86 = vld [vmem:[%s1 + $0x104] sm:$0xf]
  %v87 = vld [vmem:[%s1 + $0x108] sm:$0xf]
  %v88 = vld [vmem:[%s1 + $0x10c] sm:$0xf]
  %v89 = vld [vmem:[%s1 + $0x110] sm:$0xf]
  %v90 = vld [vmem:[%s1 + $0x114] sm:$0xf]
  %v91 = vld [vmem:[%s1 + $0x118] sm:$0xf]
  %v92 = vld [vmem:[%s1 + $0x11c] sm:$0xf]
  %v93 = vld [vmem:[%s1 + $0x120] sm:$0xf]
  %v94 = vld [vmem:[%s1 + $0x124] sm:$0xf]
  %v95 = vld [vmem:[%s1 + $0x128] sm:$0xf]
  %v96 = vld [vmem:[%s1 + $0x12c] sm:$0xf]
  %v97 = vld [vmem:[%s1 + $0x130] sm:$0xf]
  %v98 = vld [vmem:[%s1 + $0x134] sm:$0xf]
  %v99 = vld [vmem:[%s1 + $0x138] sm:$0xf]
  %v100 = vld [vmem:[%s1 + $0x13c] sm:$0xf]
  %v101 = vld [vmem:[%s1 + $0x140] sm:$0xf]
  %v102 = vld [vmem:[%s1 + $0x144] sm:$0xf]
  %v103 = vld [vmem:[%s1 + $0x148] sm:$0xf]
  %v104 = vld [vmem:[%s1 + $0x14c] sm:$0xf]
  %v105 = vld [vmem:[%s1 + $0x150] sm:$0xf]
  %v106 = vld [vmem:[%s1 + $0x154] sm:$0xf]
  %v107 = vld [vmem:[%s1 + $0x158] sm:$0xf]
  %v108 = vld [vmem:[%s1 + $0x15c] sm:$0xf]
  %v109 = vld [vmem:[%s1 + $0x160] sm:$0xf]
  %v110 = vld [vmem:[%s1 + $0x164] sm:$0xf]
  %v111 = vld [vmem:[%s1 + $0x168] sm:$0xf]
  %v112 = vld [vmem:[%s1 + $0x16c] sm:$0xf]
  %v113 = vld [vmem:[%s1 + $0x170] sm:$0xf]
  %v114 = vld [vmem:[%s1 + $0x174] sm:$0xf]
  %v115 = vld [vmem:[%s1 + $0x178] sm:$0xf]
  %v116 = vld [vmem:[%s1 + $0x17c] sm:$0xf]
  %v117 = vld [vmem:[%s1 + $0x180] sm:$0xf]
  %v118 = vld [vmem:[%s1 + $0x184] sm:$0xf]
  %v119 = vld [vmem:[%s1 + $0x188] sm:$0xf]
  %v120 = vld [vmem:[%s1 + $0x18c] sm:$0xf]
  %v121 = vld [vmem:[%s1 + $0x190] sm:$0xf]
  %v122 = vld [vmem:[%s1 + $0x194] sm:$0xf]
  %v123 = vld [vmem:[%s1 + $0x198] sm:$0xf]
  %v124 = vld [vmem:[%s1 + $0x19c] sm:$0xf]
  %v125 = vld [vmem:[%s1 + $0x1a0] sm:$0xf]
  %v126 = vld [vmem:[%s1 + $0x1a4] sm:$0xf]
  %v127 = vld [vmem:[%s1 + $0x1a8] sm:$0xf]
  %v128 = vld [vmem:[%s1 + $0x1ac] sm:$0xf]
  %v129 = vld [vmem:[%s1 + $0x1b0] sm:$0xf]
  %v130 = vld [vmem:[%s1 + $0x1b4] sm:$0xf]
  %v131 = vld [vmem:[%s1 + $0x1b8] sm:$0xf]
  %v132 = vld [vmem:[%s1 + $0x1bc] sm:$0xf]
  %v133 = vld [vmem:[%s1 + $0x1c0] sm:$0xf]
  %v134 = vld [vmem:[%s1 + $0x1c4] sm:$0xf]
  %v135 = vld [vmem:[%s1 + $0x1c8] sm:$0xf]
  %v136 = vld [vmem:[%s1 + $0x1cc] sm:$0xf]
  %v137 = vld [vmem:[%s1 + $0x1d0] sm:$0xf]
  %v138 = vld [vmem:[%s1 + $0x1d4] sm:$0xf]
  %v139 = vld [vmem:[%s1 + $0x1d8] sm:$0xf]
  %v140 = vld [vmem:[%s1 + $0x1dc] sm:$0xf]
  %v141 = vld [vmem:[%s1 + $0x1e0] sm:$0xf]
  %v142 = vld [vmem:[%s1 + $0x1e4] sm:$0xf]
  %v143 = vld [vmem:[%s1 + $0x1e8] sm:$0xf]
  %v144 = vld [vmem:[%s1 + $0x1ec] sm:$0xf]
  %v145 = vld [vmem:[%s1 + $0x1f0] sm:$0xf]
  %v146 = vld [vmem:[%s1 + $0x1f4] sm:$0xf]
  %v147 = vld [vmem:[%s1 + $0x1f8] sm:$0xf]
  %v148 = vld [vmem:[%s1 + $0x1fc] sm:$0xf]
  %v149 = vld [vmem:[#allocation2] sm:$0x1]
  %v151 = vlaneseq
  %v152 = vshrl.u32 %v151, 7
  %v153 = vsub.s32 0, %v152
  %v154 = vrot.slane %v149, %v153
  %v160 = vunpack.c.l.b16 %v17
  %v161 = vunpack.c.h.b16 %v17
  %v162 = vunpack.c.l.b16 %v18
  %v163 = vunpack.c.h.b16 %v18
  %v164 = vunpack.c.l.b16 %v19
  %v165 = vunpack.c.h.b16 %v19
  %v166 = vunpack.c.l.b16 %v20
  %v167 = vunpack.c.h.b16 %v20
  %v168 = vpack.c.b16 %v160, %v160
  %v169 = vpack.c.b16 %v161, %v161
  %v170 = vpack.c.b16 %v162, %v162
  %v171 = vpack.c.b16 %v163, %v163
  %v172 = vpack.c.b16 %v164, %v164
  %v173 = vpack.c.b16 %v165, %v165
  %v174 = vpack.c.b16 %v166, %v166
  %v175 = vpack.c.b16 %v167, %v167
  %v312 = vunpack.c.l.b16 %v21
  %v313 = vunpack.c.l.b16 %v22
  %v314 = vunpack.c.l.b16 %v23
  %v315 = vunpack.c.l.b16 %v24
  %v316 = vunpack.c.l.b16 %v25
  %v317 = vunpack.c.l.b16 %v26
  %v318 = vunpack.c.l.b16 %v27
  %v319 = vunpack.c.l.b16 %v28
  %v320 = vunpack.c.l.b16 %v29
  %v321 = vunpack.c.l.b16 %v30
  %v322 = vunpack.c.l.b16 %v31
  %v323 = vunpack.c.l.b16 %v32
  %v324 = vunpack.c.l.b16 %v33
  %v325 = vunpack.c.l.b16 %v34
  %v326 = vunpack.c.l.b16 %v35
  %v327 = vunpack.c.l.b16 %v36
  %v328 = vunpack.c.l.b16 %v37
  %v329 = vunpack.c.l.b16 %v38
  %v330 = vunpack.c.l.b16 %v39
  %v331 = vunpack.c.l.b16 %v40
  %v332 = vunpack.c.l.b16 %v41
  %v333 = vunpack.c.l.b16 %v42
  %v334 = vunpack.c.l.b16 %v43
  %v335 = vunpack.c.l.b16 %v44
  %v336 = vunpack.c.l.b16 %v45
  %v337 = vunpack.c.l.b16 %v46
  %v338 = vunpack.c.l.b16 %v47
  %v339 = vunpack.c.l.b16 %v48
  %v340 = vunpack.c.l.b16 %v49
  %v341 = vunpack.c.l.b16 %v50
  %v342 = vunpack.c.l.b16 %v51
  %v343 = vunpack.c.l.b16 %v52
  %v344 = vunpack.c.l.b16 %v53
  %v345 = vunpack.c.l.b16 %v54
  %v346 = vunpack.c.l.b16 %v55
  %v347 = vunpack.c.l.b16 %v56
  %v348 = vunpack.c.l.b16 %v57
  %v349 = vunpack.c.l.b16 %v58
  %v350 = vunpack.c.l.b16 %v59
  %v351 = vunpack.c.l.b16 %v60
  %v352 = vunpack.c.l.b16 %v61
  %v353 = vunpack.c.l.b16 %v62
  %v354 = vunpack.c.l.b16 %v63
  %v355 = vunpack.c.l.b16 %v64
  %v356 = vunpack.c.l.b16 %v65
  %v357 = vunpack.c.l.b16 %v66
  %v358 = vunpack.c.l.b16 %v67
  %v359 = vunpack.c.l.b16 %v68
  %v360 = vunpack.c.l.b16 %v69
  %v361 = vunpack.c.l.b16 %v70
  %v362 = vunpack.c.l.b16 %v71
  %v363 = vunpack.c.l.b16 %v72
  %v364 = vunpack.c.l.b16 %v73
  %v365 = vunpack.c.l.b16 %v74
  %v366 = vunpack.c.l.b16 %v75
  %v367 = vunpack.c.l.b16 %v76
  %v368 = vunpack.c.l.b16 %v77
  %v369 = vunpack.c.l.b16 %v78
  %v370 = vunpack.c.l.b16 %v79
  %v371 = vunpack.c.l.b16 %v80
  %v372 = vunpack.c.l.b16 %v81
  %v373 = vunpack.c.l.b16 %v82
  %v374 = vunpack.c.l.b16 %v83
  %v375 = vunpack.c.l.b16 %v84
  %v376 = vunpack.c.l.b16 %v85
  %v377 = vunpack.c.l.b16 %v86
  %v378 = vunpack.c.l.b16 %v87
  %v379 = vunpack.c.l.b16 %v88
  %v380 = vunpack.c.l.b16 %v89
  %v381 = vunpack.c.l.b16 %v90
  %v382 = vunpack.c.l.b16 %v91
  %v383 = vunpack.c.l.b16 %v92
  %v384 = vunpack.c.l.b16 %v93
  %v385 = vunpack.c.l.b16 %v94
  %v386 = vunpack.c.l.b16 %v95
  %v387 = vunpack.c.l.b16 %v96
  %v388 = vunpack.c.l.b16 %v97
  %v389 = vunpack.c.l.b16 %v98
  %v390 = vunpack.c.l.b16 %v99
  %v391 = vunpack.c.l.b16 %v100
  %v392 = vunpack.c.l.b16 %v101
  %v393 = vunpack.c.l.b16 %v102
  %v394 = vunpack.c.l.b16 %v103
  %v395 = vunpack.c.l.b16 %v104
  %v396 = vunpack.c.l.b16 %v105
  %v397 = vunpack.c.l.b16 %v106
  %v398 = vunpack.c.l.b16 %v107
  %v399 = vunpack.c.l.b16 %v108
  %v400 = vunpack.c.l.b16 %v109
  %v401 = vunpack.c.l.b16 %v110
  %v402 = vunpack.c.l.b16 %v111
  %v403 = vunpack.c.l.b16 %v112
  %v404 = vunpack.c.l.b16 %v113
  %v405 = vunpack.c.l.b16 %v114
  %v406 = vunpack.c.l.b16 %v115
  %v407 = vunpack.c.l.b16 %v116
  %v408 = vunpack.c.l.b16 %v117
  %v409 = vunpack.c.l.b16 %v118
  %v410 = vunpack.c.l.b16 %v119
  %v411 = vunpack.c.l.b16 %v120
  %v412 = vunpack.c.l.b16 %v121
  %v413 = vunpack.c.l.b16 %v122
  %v414 = vunpack.c.l.b16 %v123
  %v415 = vunpack.c.l.b16 %v124
  %v416 = vunpack.c.l.b16 %v125
  %v417 = vunpack.c.l.b16 %v126
  %v418 = vunpack.c.l.b16 %v127
  %v419 = vunpack.c.l.b16 %v128
  %v420 = vunpack.c.l.b16 %v129
  %v421 = vunpack.c.l.b16 %v130
  %v422 = vunpack.c.l.b16 %v131
  %v423 = vunpack.c.l.b16 %v132
  %v424 = vunpack.c.l.b16 %v133
  %v425 = vunpack.c.l.b16 %v134
  %v426 = vunpack.c.l.b16 %v135
  %v427 = vunpack.c.l.b16 %v136
  %v428 = vunpack.c.l.b16 %v137
  %v429 = vunpack.c.l.b16 %v138
  %v430 = vunpack.c.l.b16 %v139
  %v431 = vunpack.c.l.b16 %v140
  %v432 = vunpack.c.l.b16 %v141
  %v433 = vunpack.c.l.b16 %v142
  %v434 = vunpack.c.l.b16 %v143
  %v435 = vunpack.c.l.b16 %v144
  %v436 = vunpack.c.l.b16 %v145
  %v437 = vunpack.c.l.b16 %v146
  %v438 = vunpack.c.l.b16 %v147
  %v439 = vunpack.c.l.b16 %v148
  %v440 = vpack.c.b16 %v313, %v312
  %v441 = vpack.c.b16 %v315, %v314
  %v442 = vpack.c.b16 %v317, %v316
  %v443 = vpack.c.b16 %v319, %v318
  %v444 = vpack.c.b16 %v321, %v320
  %v445 = vpack.c.b16 %v323, %v322
  %v446 = vpack.c.b16 %v325, %v324
  %v447 = vpack.c.b16 %v327, %v326
  %v448 = vpack.c.b16 %v329, %v328
  %v449 = vpack.c.b16 %v331, %v330
  %v450 = vpack.c.b16 %v333, %v332
  %v451 = vpack.c.b16 %v335, %v334
  %v452 = vpack.c.b16 %v337, %v336
  %v453 = vpack.c.b16 %v339, %v338
  %v454 = vpack.c.b16 %v341, %v340
  %v455 = vpack.c.b16 %v343, %v342
  %v456 = vpack.c.b16 %v345, %v344
  %v457 = vpack.c.b16 %v347, %v346
  %v458 = vpack.c.b16 %v349, %v348
  %v459 = vpack.c.b16 %v351, %v350
  %v460 = vpack.c.b16 %v353, %v352
  %v461 = vpack.c.b16 %v355, %v354
  %v462 = vpack.c.b16 %v357, %v356
  %v463 = vpack.c.b16 %v359, %v358
  %v464 = vpack.c.b16 %v361, %v360
  %v465 = vpack.c.b16 %v363, %v362
  %v466 = vpack.c.b16 %v365, %v364
  %v467 = vpack.c.b16 %v367, %v366
  %v468 = vpack.c.b16 %v369, %v368
  %v469 = vpack.c.b16 %v371, %v370
  %v470 = vpack.c.b16 %v373, %v372
  %v471 = vpack.c.b16 %v375, %v374
  %v472 = vpack.c.b16 %v377, %v376
  %v473 = vpack.c.b16 %v379, %v378
  %v474 = vpack.c.b16 %v381, %v380
  %v475 = vpack.c.b16 %v383, %v382
  %v476 = vpack.c.b16 %v385, %v384
  %v477 = vpack.c.b16 %v387, %v386
  %v478 = vpack.c.b16 %v389, %v388
  %v479 = vpack.c.b16 %v391, %v390
  %v480 = vpack.c.b16 %v393, %v392
  %v481 = vpack.c.b16 %v395, %v394
  %v482 = vpack.c.b16 %v397, %v396
  %v483 = vpack.c.b16 %v399, %v398
  %v484 = vpack.c.b16 %v401, %v400
  %v485 = vpack.c.b16 %v403, %v402
  %v486 = vpack.c.b16 %v405, %v404
  %v487 = vpack.c.b16 %v407, %v406
  %v488 = vpack.c.b16 %v409, %v408
  %v489 = vpack.c.b16 %v411, %v410
  %v490 = vpack.c.b16 %v413, %v412
  %v491 = vpack.c.b16 %v415, %v414
  %v492 = vpack.c.b16 %v417, %v416
  %v493 = vpack.c.b16 %v419, %v418
  %v494 = vpack.c.b16 %v421, %v420
  %v495 = vpack.c.b16 %v423, %v422
  %v496 = vpack.c.b16 %v425, %v424
  %v497 = vpack.c.b16 %v427, %v426
  %v498 = vpack.c.b16 %v429, %v428
  %v499 = vpack.c.b16 %v431, %v430
  %v500 = vpack.c.b16 %v433, %v432
  %v501 = vpack.c.b16 %v435, %v434
  %v502 = vpack.c.b16 %v437, %v436
  %v503 = vpack.c.b16 %v439, %v438
  %568 = vmatprep.subr.bf16.mxu0 0
  %569 = vmatpush1.bf16.msra.mxu0 %v440
  %570 = vmatprep.subr.bf16.mxu0 0
  %571 = vmatpush1.bf16.msra.mxu0 %v441
  %572 = vmatprep.subr.bf16.mxu0 0
  %573 = vmatpush1.bf16.msra.mxu0 %v442
  %574 = vmatprep.subr.bf16.mxu0 0
  %575 = vmatpush1.bf16.msra.mxu0 %v443
  %576 = vmatprep.subr.bf16.mxu0 0
  %577 = vmatpush1.bf16.msra.mxu0 %v444
  %578 = vmatprep.subr.bf16.mxu0 0
  %579 = vmatpush1.bf16.msra.mxu0 %v445
  %580 = vmatprep.subr.bf16.mxu0 0
  %581 = vmatpush1.bf16.msra.mxu0 %v446
  %582 = vmatprep.subr.bf16.mxu0 0
  %583 = vmatpush1.bf16.msra.mxu0 %v447
  %584 = vmatprep.subr.bf16.mxu0 0
  %585 = vmatpush1.bf16.msra.mxu0 %v448
  %586 = vmatprep.subr.bf16.mxu0 0
  %587 = vmatpush1.bf16.msra.mxu0 %v449
  %588 = vmatprep.subr.bf16.mxu0 0
  %589 = vmatpush1.bf16.msra.mxu0 %v450
  %590 = vmatprep.subr.bf16.mxu0 0
  %591 = vmatpush1.bf16.msra.mxu0 %v451
  %592 = vmatprep.subr.bf16.mxu0 0
  %593 = vmatpush1.bf16.msra.mxu0 %v452
  %594 = vmatprep.subr.bf16.mxu0 0
  %595 = vmatpush1.bf16.msra.mxu0 %v453
  %596 = vmatprep.subr.bf16.mxu0 0
  %597 = vmatpush1.bf16.msra.mxu0 %v454
  %598 = vmatprep.subr.bf16.mxu0 0
  %599 = vmatpush1.bf16.msra.mxu0 %v455
  %600 = vmatprep.mubr.bf16.mxu0 %v169
  %601 = vmatmul.mubr.bf16.gmra.mrb[0].mxu0 %v168
  %v602 = vpop.f32.mrb[0].mxu0
  %v603 = vadd.f32 %v154, %v602
  %v604 = vpop.f32.mrb[0].mxu0
  %v605 = vpop.f32.mrb[0].mxu0
  %v606 = vpop.f32.mrb[0].mxu0
  %607 = vdwg.mxu0
  %608 = vmatprep.subr.bf16.mxu0 0
  %609 = vmatpush1.bf16.msra.mxu0 %v456
  %610 = vmatprep.subr.bf16.mxu0 0
  %611 = vmatpush1.bf16.msra.mxu0 %v457
  %612 = vmatprep.subr.bf16.mxu0 0
  %613 = vmatpush1.bf16.msra.mxu0 %v458
  %614 = vmatprep.subr.bf16.mxu0 0
  %615 = vmatpush1.bf16.msra.mxu0 %v459
  %616 = vmatprep.subr.bf16.mxu0 0
  %617 = vmatpush1.bf16.msra.mxu0 %v460
  %618 = vmatprep.subr.bf16.mxu0 0
  %619 = vmatpush1.bf16.msra.mxu0 %v461
  %620 = vmatprep.subr.bf16.mxu0 0
  %621 = vmatpush1.bf16.msra.mxu0 %v462
  %622 = vmatprep.subr.bf16.mxu0 0
  %623 = vmatpush1.bf16.msra.mxu0 %v463
  %624 = vmatprep.subr.bf16.mxu0 0
  %625 = vmatpush1.bf16.msra.mxu0 %v464
  %626 = vmatprep.subr.bf16.mxu0 0
  %627 = vmatpush1.bf16.msra.mxu0 %v465
  %628 = vmatprep.subr.bf16.mxu0 0
  %629 = vmatpush1.bf16.msra.mxu0 %v466
  %630 = vmatprep.subr.bf16.mxu0 0
  %631 = vmatpush1.bf16.msra.mxu0 %v467
  %632 = vmatprep.subr.bf16.mxu0 0
  %633 = vmatpush1.bf16.msra.mxu0 %v468
  %634 = vmatprep.subr.bf16.mxu0 0
  %635 = vmatpush1.bf16.msra.mxu0 %v469
  %636 = vmatprep.subr.bf16.mxu0 0
  %637 = vmatpush1.bf16.msra.mxu0 %v470
  %638 = vmatprep.subr.bf16.mxu0 0
  %639 = vmatpush1.bf16.msra.mxu0 %v471
  %640 = vmatprep.mubr.bf16.mxu0 %v171
  %641 = vmatmul.mubr.bf16.gmra.mrb[0].mxu0 %v170
  %v642 = vpop.f32.mrb[0].mxu0
  %v643 = vadd.f32 %v603, %v642
  %v644 = vpop.f32.mrb[0].mxu0
  %v645 = vpop.f32.mrb[0].mxu0
  %v646 = vpop.f32.mrb[0].mxu0
  %647 = vdwg.mxu0
  %648 = vmatprep.subr.bf16.mxu0 0
  %649 = vmatpush1.bf16.msra.mxu0 %v472
  %650 = vmatprep.subr.bf16.mxu0 0
  %651 = vmatpush1.bf16.msra.mxu0 %v473
  %652 = vmatprep.subr.bf16.mxu0 0
  %653 = vmatpush1.bf16.msra.mxu0 %v474
  %654 = vmatprep.subr.bf16.mxu0 0
  %655 = vmatpush1.bf16.msra.mxu0 %v475
  %656 = vmatprep.subr.bf16.mxu0 0
  %657 = vmatpush1.bf16.msra.mxu0 %v476
  %658 = vmatprep.subr.bf16.mxu0 0
  %659 = vmatpush1.bf16.msra.mxu0 %v477
  %660 = vmatprep.subr.bf16.mxu0 0
  %661 = vmatpush1.bf16.msra.mxu0 %v478
  %662 = vmatprep.subr.bf16.mxu0 0
  %663 = vmatpush1.bf16.msra.mxu0 %v479
  %664 = vmatprep.subr.bf16.mxu0 0
  %665 = vmatpush1.bf16.msra.mxu0 %v480
  %666 = vmatprep.subr.bf16.mxu0 0
  %667 = vmatpush1.bf16.msra.mxu0 %v481
  %668 = vmatprep.subr.bf16.mxu0 0
  %669 = vmatpush1.bf16.msra.mxu0 %v482
  %670 = vmatprep.subr.bf16.mxu0 0
  %671 = vmatpush1.bf16.msra.mxu0 %v483
  %672 = vmatprep.subr.bf16.mxu0 0
  %673 = vmatpush1.bf16.msra.mxu0 %v484
  %674 = vmatprep.subr.bf16.mxu0 0
  %675 = vmatpush1.bf16.msra.mxu0 %v485
  %676 = vmatprep.subr.bf16.mxu0 0
  %677 = vmatpush1.bf16.msra.mxu0 %v486
  %678 = vmatprep.subr.bf16.mxu0 0
  %679 = vmatpush1.bf16.msra.mxu0 %v487
  %680 = vmatprep.mubr.bf16.mxu0 %v173
  %681 = vmatmul.mubr.bf16.gmra.mrb[0].mxu0 %v172
  %v682 = vpop.f32.mrb[0].mxu0
  %v683 = vadd.f32 %v643, %v682
  %v684 = vpop.f32.mrb[0].mxu0
  %v685 = vpop.f32.mrb[0].mxu0
  %v686 = vpop.f32.mrb[0].mxu0
  %687 = vdwg.mxu0
  %688 = vmatprep.subr.bf16.mxu0 0
  %689 = vmatpush1.bf16.msra.mxu0 %v488
  %690 = vmatprep.subr.bf16.mxu0 0
  %691 = vmatpush1.bf16.msra.mxu0 %v489
  %692 = vmatprep.subr.bf16.mxu0 0
  %693 = vmatpush1.bf16.msra.mxu0 %v490
  %694 = vmatprep.subr.bf16.mxu0 0
  %695 = vmatpush1.bf16.msra.mxu0 %v491
  %696 = vmatprep.subr.bf16.mxu0 0
  %697 = vmatpush1.bf16.msra.mxu0 %v492
  %698 = vmatprep.subr.bf16.mxu0 0
  %699 = vmatpush1.bf16.msra.mxu0 %v493
  %700 = vmatprep.subr.bf16.mxu0 0
  %701 = vmatpush1.bf16.msra.mxu0 %v494
  %702 = vmatprep.subr.bf16.mxu0 0
  %703 = vmatpush1.bf16.msra.mxu0 %v495
  %704 = vmatprep.subr.bf16.mxu0 0
  %705 = vmatpush1.bf16.msra.mxu0 %v496
  %706 = vmatprep.subr.bf16.mxu0 0
  %707 = vmatpush1.bf16.msra.mxu0 %v497
  %708 = vmatprep.subr.bf16.mxu0 0
  %709 = vmatpush1.bf16.msra.mxu0 %v498
  %710 = vmatprep.subr.bf16.mxu0 0
  %711 = vmatpush1.bf16.msra.mxu0 %v499
  %712 = vmatprep.subr.bf16.mxu0 0
  %713 = vmatpush1.bf16.msra.mxu0 %v500
  %714 = vmatprep.subr.bf16.mxu0 0
  %715 = vmatpush1.bf16.msra.mxu0 %v501
  %716 = vmatprep.subr.bf16.mxu0 0
  %717 = vmatpush1.bf16.msra.mxu0 %v502
  %718 = vmatprep.subr.bf16.mxu0 0
  %719 = vmatpush1.bf16.msra.mxu0 %v503
  %720 = vmatprep.mubr.bf16.mxu0 %v175
  %721 = vmatmul.mubr.bf16.gmra.mrb[0].mxu0 %v174
  %v722 = vpop.f32.mrb[0].mxu0
  %v723 = vadd.f32 %v683, %v722
  %v724 = vpop.f32.mrb[0].mxu0
  %v725 = vpop.f32.mrb[0].mxu0
  %v726 = vpop.f32.mrb[0].mxu0
  %727 = vdwg.mxu0
  %vm728 = vcmask 7168
  %729 = vst.msk [vmem:[%s3] sm:$0xff] %vm728, %v723
  // Predicated region
  $region14: #{_lambda_.9} parent=0 // pred_check
    _
  $region15: #{_lambda_.9} parent=0 // pred_check_branch
    %731 = sbr.rel (0) target = $region17
  $region16: #{_lambda_.9} parent=0 // pred_region
    _
  $region17: #{_lambda_.9} parent=0 // pred_fallthru
    _
  // Predicated region
  $region18: #{_lambda_.9} parent=0 // pred_check
    _
  $region19: #{_lambda_.9} parent=0 // pred_check_branch
    %733 = sbr.rel (0) target = $region21
  $region20: #{_lambda_.9} parent=0 // pred_region
    _
  $region21: #{_lambda_.9} parent=0 // pred_fallthru
    _

</llo_original>
